<compile_context>
chip_gen: v5e
topology: v5e:2x2
jax: 0.10.0
libtpu: 0.0.40
codegen_flags: <defaults>
</compile_context>

<pallas_src>
import functools

import jax
import jax.numpy as jnp
from jax import lax
from jax.experimental import pallas as pl
from jax.experimental.pallas import tpu as pltpu

MESSAGE_SIZE = 32
HIDDEN_SIZE = 128


# ------------------------------ fused kernel -------------------------------

def _fused_pmhci_kernel(
    x_ref,            # VMEM (N, F)
    edge_attr_ref,    # VMEM (E, Fe)
    batch_ref,        # VMEM (1, N)  int32
    src_col_ref,      # VMEM (E, 1)  int32   source node id per edge
    dst_col_ref,      # VMEM (E, 1)  int32   destination node id per edge
    src_row_ref,      # VMEM (1, E)  int32   source node id per edge (row layout)
    *refs,            # 2 x 6 conv params, 6 graph params, out_ref
):
    conv1_params = refs[0:6]
    conv2_params = refs[6:12]
    gw1, gb1, gw2, gb2, gw3, gb3 = refs[12:18]
    out_ref = refs[18]

    n_nodes = x_ref.shape[0]
    n_edges = edge_attr_ref.shape[0]
    n_graphs = out_ref.shape[0]

    x = x_ref[...]
    edge_attr = edge_attr_ref[...]

    # One-hot gather / scatter matrices, built once and shared by both layers.
    # All compares are VPU broadcasts; all contractions below are plain MXU dots.
    edge_iota_en = lax.broadcasted_iota(jnp.int32, (n_edges, n_nodes), 1)
    gsrc = (edge_iota_en == src_col_ref[...]).astype(jnp.float32)    # (E, N)
    gdst = (edge_iota_en == dst_col_ref[...]).astype(jnp.float32)    # (E, N)
    node_iota_ne = lax.broadcasted_iota(jnp.int32, (n_nodes, n_edges), 0)
    gsrc_t = (node_iota_ne == src_row_ref[...]).astype(jnp.float32)  # (N, E)

    def conv_layer(h, w_srcdst, w_edge, b_edge, w_self, w_msg, b_node):
        # Fused node-level projection: [xa | xb] = h @ [W_src | W_dst]  (N, 64)
        xab = jnp.dot(h, w_srcdst[...], preferred_element_type=jnp.float32)
        xa = xab[:, :MESSAGE_SIZE]
        xb = xab[:, MESSAGE_SIZE:]
        em = (jnp.dot(edge_attr, w_edge[...], preferred_element_type=jnp.float32)
              + b_edge[...])                                          # (E, 32)
        # Edge-MLP: gather via one-hot matmuls, then ReLU.
        msg = jnp.maximum(
            jnp.dot(gsrc, xa, preferred_element_type=jnp.float32)
            + jnp.dot(gdst, xb, preferred_element_type=jnp.float32)
            + em,
            0.0)                                                      # (E, 32)
        # scatter_sum onto source nodes as (N,E) @ (E,32).
        sums = jnp.dot(gsrc_t, msg, preferred_element_type=jnp.float32)  # (N, 32)
        # Node-MLP.
        h_new = (
            jnp.dot(h, w_self[...], preferred_element_type=jnp.float32)
            + jnp.dot(sums, w_msg[...], preferred_element_type=jnp.float32)
            + b_node[...])
        return jnp.maximum(h_new, 0.0)

    h = conv_layer(x, *conv1_params)      # _external1
    h = conv_layer(h, *conv2_params)      # _external2

    # scatter_mean over graph assignment: tiny (G, N) membership matmul.
    gid = lax.broadcasted_iota(jnp.int32, (n_graphs, n_nodes), 0)
    member = (gid == batch_ref[...]).astype(jnp.float32)                  # (G, N)
    graph_sums = jnp.dot(member, h, preferred_element_type=jnp.float32)   # (G, F)
    counts = jnp.sum(member, axis=1, keepdims=True)                       # (G, 1)
    graph_input = graph_sums / jnp.maximum(counts, 1.0)

    # Graph MLP (fused; only the final (G, out) tensor is stored).
    z = jnp.maximum(
        jnp.dot(graph_input, gw1[...], preferred_element_type=jnp.float32)
        + gb1[...], 0.0)
    z = jnp.maximum(
        jnp.dot(z, gw2[...], preferred_element_type=jnp.float32) + gb2[...], 0.0)
    z = jnp.dot(z, gw3[...], preferred_element_type=jnp.float32) + gb3[...]
    out_ref[...] = z.astype(out_ref.dtype)


# ------------------------------ host wrapper --------------------------------

def _full_spec(shape):
    nd = len(shape)
    return pl.BlockSpec(tuple(shape), lambda i, _nd=nd: (0,) * _nd)


def _cost_estimate(n_nodes, n_edges, n_graphs, in_f, edge_f, out_f, inputs):
    mm = lambda m, k, n: 2 * m * k * n
    conv = (mm(n_nodes, in_f, 2 * MESSAGE_SIZE)          # fused src/dst proj
            + mm(n_edges, edge_f, MESSAGE_SIZE)          # edge-feature proj
            + 2 * mm(n_edges, n_nodes, MESSAGE_SIZE)     # one-hot gathers
            + mm(n_nodes, n_edges, MESSAGE_SIZE)         # one-hot scatter_sum
            + mm(n_nodes, in_f, in_f)                    # node self term
            + mm(n_nodes, MESSAGE_SIZE, in_f))           # node msg term
    graph = (mm(n_graphs, n_nodes, in_f)
             + mm(n_graphs, in_f, HIDDEN_SIZE)
             + mm(n_graphs, HIDDEN_SIZE, HIDDEN_SIZE)
             + mm(n_graphs, HIDDEN_SIZE, out_f))
    flops = 2 * conv + graph
    bytes_accessed = (sum(int(a.size) * a.dtype.itemsize for a in inputs)
                      + n_graphs * out_f * 4)
    return pl.CostEstimate(flops=flops, transcendentals=0,
                           bytes_accessed=bytes_accessed)


@functools.partial(jax.jit, static_argnums=5)
def pmhci_network03_forward(kparams, x, edge_index, edge_attr, batch, num_graphs):
    n_nodes, in_f = x.shape
    n_edges, edge_f = edge_attr.shape
    out_f = kparams["graph"]["w3"].shape[1]

    ei = edge_index.astype(jnp.int32)
    src_col = ei[0].reshape(n_edges, 1)
    dst_col = ei[1].reshape(n_edges, 1)
    src_row = ei[0].reshape(1, n_edges)
    batch2d = batch.reshape(1, n_nodes).astype(jnp.int32)

    inputs = [x, edge_attr, batch2d, src_col, dst_col, src_row]
    for name in ("ext1", "ext2"):
        p = kparams[name]
        inputs += [p["w_srcdst"], p["w_edge"], p["b_edge"],
                   p["w_self"], p["w_msg"], p["b_node"]]
    gp = kparams["graph"]
    inputs += [gp["w1"], gp["b1"], gp["w2"], gp["b2"], gp["w3"], gp["b3"]]

    in_specs = [_full_spec(a.shape) for a in inputs]
    ce = _cost_estimate(n_nodes, n_edges, num_graphs, in_f, edge_f, out_f, inputs)

    return pl.pallas_call(
        _fused_pmhci_kernel,
        out_shape=jax.ShapeDtypeStruct((num_graphs, out_f), jnp.float32),
        grid=(1,),
        in_specs=in_specs,
        out_specs=_full_spec((num_graphs, out_f)),
        compiler_params=pltpu.CompilerParams(dimension_semantics=("arbitrary",)),
        cost_estimate=ce,
    )(*inputs)


# ------------------------------ param init ----------------------------------

def _init_linear(key, fan_in, fan_out):
    kw, kb = jax.random.split(key)
    bound = 1.0 / jnp.sqrt(jnp.float32(fan_in))
    w = jax.random.uniform(kw, (fan_in, fan_out), jnp.float32, -bound, bound)
    b = jax.random.uniform(kb, (1, fan_out), jnp.float32, -bound, bound)
    return w, b


def init_params(key, input_shape, output_shape, input_shape_edge):
    """Raw parameters, laid out exactly like the PyTorch module."""
    edge_in = 2 * input_shape + input_shape_edge
    node_in = input_shape + MESSAGE_SIZE
    keys = jax.random.split(key, 7)
    params = {}
    for i, name in enumerate(("ext1", "ext2")):
        ew, eb = _init_linear(keys[2 * i], edge_in, MESSAGE_SIZE)
        nw, nb = _init_linear(keys[2 * i + 1], node_in, input_shape)
        params[name] = {"edge_w": ew, "edge_b": eb, "node_w": nw, "node_b": nb}
    g1w, g1b = _init_linear(keys[4], input_shape, HIDDEN_SIZE)
    g2w, g2b = _init_linear(keys[5], HIDDEN_SIZE, HIDDEN_SIZE)
    g3w, g3b = _init_linear(keys[6], HIDDEN_SIZE, output_shape)
    params["graph"] = {"w1": g1w, "b1": g1b, "w2": g2w, "b2": g2b,
                       "w3": g3w, "b3": g3b}
    return params


def prepare_params(params, input_shape):
    """One-time (outside the jitted forward) re-layout of weights for the kernel.

    The edge-MLP weight is split/concatenated so the per-layer source/destination
    projections become a single (F, 64) matmul; the node-MLP weight is split so
    no torch.cat is needed in the kernel.  Done here once instead of slicing
    inside the jitted wrapper on every call.
    """
    F = input_shape
    kp = {}
    for name in ("ext1", "ext2"):
        p = params[name]
        ew, nw = p["edge_w"], p["node_w"]
        kp[name] = {
            "w_srcdst": jnp.concatenate([ew[:F], ew[F:2 * F]], axis=1),  # (F, 64)
            "w_edge": ew[2 * F:],                                        # (Fe, 32)
            "b_edge": p["edge_b"],
            "w_self": nw[:F],                                            # (F, F)
            "w_msg": nw[F:],                                             # (32, F)
            "b_node": p["node_b"],
        }
    kp["graph"] = dict(params["graph"])
    return kp


# ------------------------------- reference ----------------------------------

def _ref_forward(params, x, edge_index, edge_attr, batch, num_graphs):
    def conv(p, nf):
        n0 = nf[edge_index[0]]
        n1 = nf[edge_index[1]]
        mi = jnp.concatenate([n0, n1, edge_attr], axis=1)
        msg = jax.nn.relu(mi @ p["edge_w"] + p["edge_b"])
        sums = jnp.zeros((nf.shape[0], msg.shape[1]), jnp.float32)
        sums = sums.at[edge_index[0]].add(msg)
        ni = jnp.concatenate([nf, sums], axis=1)
        return jax.nn.relu(ni @ p["node_w"] + p["node_b"])

    h = conv(params["ext1"], x)
    h = conv(params["ext2"], h)
    sums = jnp.zeros((num_graphs, h.shape[1]), jnp.float32).at[batch].add(h)
    cnts = jnp.zeros((num_graphs,), jnp.float32).at[batch].add(1.0)
    gfeat = sums / jnp.where(cnts > 0, cnts, 1.0)[:, None]
    gp = params["graph"]
    z = jax.nn.relu(gfeat @ gp["w1"] + gp["b1"])
    z = jax.nn.relu(z @ gp["w2"] + gp["b2"])
    return z @ gp["w3"] + gp["b3"]


# --------------------------------- main --------------------------------------

if __name__ == "__main__":
    key = jax.random.PRNGKey(0)
    k_param, k_x, k_e, k_ea = jax.random.split(key, 4)

    INPUT_SHAPE = 16        # node features
    INPUT_SHAPE_EDGE = 8    # edge features
    OUTPUT_SHAPE = 4        # per-graph outputs
    N_NODES, N_EDGES, N_GRAPHS = 24, 48, 2

    params = init_params(k_param, INPUT_SHAPE, OUTPUT_SHAPE, INPUT_SHAPE_EDGE)
    kparams = prepare_params(params, INPUT_SHAPE)   # one-time weight re-layout

    x = jax.random.normal(k_x, (N_NODES, INPUT_SHAPE), jnp.float32)
    # Random edges: with E=48 over N=24 nodes there are repeated source nodes,
    # exercising duplicate-index accumulation in the one-hot scatter.
    edge_index = jax.random.randint(k_e, (2, N_EDGES), 0, N_NODES, jnp.int32)
    edge_attr = jax.random.normal(k_ea, (N_EDGES, INPUT_SHAPE_EDGE), jnp.float32)
    batch = jnp.concatenate(
        [jnp.zeros((N_NODES // 2,), jnp.int32),
         jnp.ones((N_NODES - N_NODES // 2,), jnp.int32)]
    )

    out = pmhci_network03_forward(kparams, x, edge_index, edge_attr, batch, N_GRAPHS)
    out = jax.block_until_ready(out)

    ref = _ref_forward(params, x, edge_index, edge_attr, batch, N_GRAPHS)
    assert out.shape == (N_GRAPHS, OUTPUT_SHAPE)
    assert jnp.allclose(out, ref, atol=1e-4, rtol=1e-4), (
        f"max abs diff = {jnp.max(jnp.abs(out - ref))}")

    print("KERNEL_OK")
</pallas_src>

<mosaic_0001>
module attributes {stable_mosaic.version = 11 : i64} {
  func.func @_fused_pmhci_kernel(%arg0: i32, %arg1: memref<24x16xf32, #tpu.memory_space<vmem>>, %arg2: memref<48x8xf32, #tpu.memory_space<vmem>>, %arg3: memref<1x24xi32, #tpu.memory_space<vmem>>, %arg4: memref<48x1xi32, #tpu.memory_space<vmem>>, %arg5: memref<48x1xi32, #tpu.memory_space<vmem>>, %arg6: memref<1x48xi32, #tpu.memory_space<vmem>>, %arg7: memref<16x64xf32, #tpu.memory_space<vmem>>, %arg8: memref<8x32xf32, #tpu.memory_space<vmem>>, %arg9: memref<1x32xf32, #tpu.memory_space<vmem>>, %arg10: memref<16x16xf32, #tpu.memory_space<vmem>>, %arg11: memref<32x16xf32, #tpu.memory_space<vmem>>, %arg12: memref<1x16xf32, #tpu.memory_space<vmem>>, %arg13: memref<16x64xf32, #tpu.memory_space<vmem>>, %arg14: memref<8x32xf32, #tpu.memory_space<vmem>>, %arg15: memref<1x32xf32, #tpu.memory_space<vmem>>, %arg16: memref<16x16xf32, #tpu.memory_space<vmem>>, %arg17: memref<32x16xf32, #tpu.memory_space<vmem>>, %arg18: memref<1x16xf32, #tpu.memory_space<vmem>>, %arg19: memref<16x128xf32, #tpu.memory_space<vmem>>, %arg20: memref<1x128xf32, #tpu.memory_space<vmem>>, %arg21: memref<128x128xf32, #tpu.memory_space<vmem>>, %arg22: memref<1x128xf32, #tpu.memory_space<vmem>>, %arg23: memref<128x4xf32, #tpu.memory_space<vmem>>, %arg24: memref<1x4xf32, #tpu.memory_space<vmem>>, %arg25: memref<2x4xf32, #tpu.memory_space<vmem>>) attributes {dimension_semantics = [#tpu.dimension_semantics<arbitrary>], iteration_bounds = array<i64: 1>, scalar_prefetch = 0 : i64, scratch_operands = 0 : i64, tpu.core_type = #tpu.core_type<tc>, window_params = [{pipeline_mode = #tpu.pipeline_mode<synchronous>, transform_indices = @transform_0, window_bounds = array<i64: 24, 16>}, {pipeline_mode = #tpu.pipeline_mode<synchronous>, transform_indices = @transform_1, window_bounds = array<i64: 48, 8>}, {pipeline_mode = #tpu.pipeline_mode<synchronous>, transform_indices = @transform_2, window_bounds = array<i64: 1, 24>}, {pipeline_mode = #tpu.pipeline_mode<synchronous>, transform_indices = @transform_3, window_bounds = array<i64: 48, 1>}, {pipeline_mode = #tpu.pipeline_mode<synchronous>, transform_indices = @transform_4, window_bounds = array<i64: 48, 1>}, {pipeline_mode = #tpu.pipeline_mode<synchronous>, transform_indices = @transform_5, window_bounds = array<i64: 1, 48>}, {pipeline_mode = #tpu.pipeline_mode<synchronous>, transform_indices = @transform_6, window_bounds = array<i64: 16, 64>}, {pipeline_mode = #tpu.pipeline_mode<synchronous>, transform_indices = @transform_7, window_bounds = array<i64: 8, 32>}, {pipeline_mode = #tpu.pipeline_mode<synchronous>, transform_indices = @transform_8, window_bounds = array<i64: 1, 32>}, {pipeline_mode = #tpu.pipeline_mode<synchronous>, transform_indices = @transform_9, window_bounds = array<i64: 16, 16>}, {pipeline_mode = #tpu.pipeline_mode<synchronous>, transform_indices = @transform_10, window_bounds = array<i64: 32, 16>}, {pipeline_mode = #tpu.pipeline_mode<synchronous>, transform_indices = @transform_11, window_bounds = array<i64: 1, 16>}, {pipeline_mode = #tpu.pipeline_mode<synchronous>, transform_indices = @transform_12, window_bounds = array<i64: 16, 64>}, {pipeline_mode = #tpu.pipeline_mode<synchronous>, transform_indices = @transform_13, window_bounds = array<i64: 8, 32>}, {pipeline_mode = #tpu.pipeline_mode<synchronous>, transform_indices = @transform_14, window_bounds = array<i64: 1, 32>}, {pipeline_mode = #tpu.pipeline_mode<synchronous>, transform_indices = @transform_15, window_bounds = array<i64: 16, 16>}, {pipeline_mode = #tpu.pipeline_mode<synchronous>, transform_indices = @transform_16, window_bounds = array<i64: 32, 16>}, {pipeline_mode = #tpu.pipeline_mode<synchronous>, transform_indices = @transform_17, window_bounds = array<i64: 1, 16>}, {pipeline_mode = #tpu.pipeline_mode<synchronous>, transform_indices = @transform_18, window_bounds = array<i64: 16, 128>}, {pipeline_mode = #tpu.pipeline_mode<synchronous>, transform_indices = @transform_19, window_bounds = array<i64: 1, 128>}, {pipeline_mode = #tpu.pipeline_mode<synchronous>, transform_indices = @transform_20, window_bounds = array<i64: 128, 128>}, {pipeline_mode = #tpu.pipeline_mode<synchronous>, transform_indices = @transform_21, window_bounds = array<i64: 1, 128>}, {pipeline_mode = #tpu.pipeline_mode<synchronous>, transform_indices = @transform_22, window_bounds = array<i64: 128, 4>}, {pipeline_mode = #tpu.pipeline_mode<synchronous>, transform_indices = @transform_23, window_bounds = array<i64: 1, 4>}, {pipeline_mode = #tpu.pipeline_mode<synchronous>, transform_indices = @transform_24, window_bounds = array<i64: 2, 4>}]} {
    %c0 = arith.constant 0 : index
    %c0_0 = arith.constant 0 : index
    %0 = vector.load %arg1[%c0, %c0_0] : memref<24x16xf32, #tpu.memory_space<vmem>>, vector<24x16xf32>
    %c0_1 = arith.constant 0 : index
    %c0_2 = arith.constant 0 : index
    %1 = vector.load %arg2[%c0_1, %c0_2] : memref<48x8xf32, #tpu.memory_space<vmem>>, vector<48x8xf32>
    %2 = tpu.iota {dimensions = array<i32: 1>} : vector<48x24xi32>
    %c0_3 = arith.constant 0 : index
    %c0_4 = arith.constant 0 : index
    %3 = vector.load %arg4[%c0_3, %c0_4] : memref<48x1xi32, #tpu.memory_space<vmem>>, vector<48x1xi32>
    %4 = vector.broadcast %3 : vector<48x1xi32> to vector<48x24xi32>
    %5 = arith.cmpi eq, %2, %4 : vector<48x24xi32>
    %6 = arith.extui %5 : vector<48x24xi1> to vector<48x24xi32>
    %7 = arith.sitofp %6 : vector<48x24xi32> to vector<48x24xf32>
    %c0_5 = arith.constant 0 : index
    %c0_6 = arith.constant 0 : index
    %8 = vector.load %arg5[%c0_5, %c0_6] : memref<48x1xi32, #tpu.memory_space<vmem>>, vector<48x1xi32>
    %9 = vector.broadcast %8 : vector<48x1xi32> to vector<48x24xi32>
    %10 = arith.cmpi eq, %2, %9 : vector<48x24xi32>
    %11 = arith.extui %10 : vector<48x24xi1> to vector<48x24xi32>
    %12 = arith.sitofp %11 : vector<48x24xi32> to vector<48x24xf32>
    %13 = tpu.iota {dimensions = array<i32: 0>} : vector<24x48xi32>
    %c0_7 = arith.constant 0 : index
    %c0_8 = arith.constant 0 : index
    %14 = vector.load %arg6[%c0_7, %c0_8] : memref<1x48xi32, #tpu.memory_space<vmem>>, vector<1x48xi32>
    %15 = vector.broadcast %14 : vector<1x48xi32> to vector<24x48xi32>
    %16 = arith.cmpi eq, %13, %15 : vector<24x48xi32>
    %17 = arith.extui %16 : vector<24x48xi1> to vector<24x48xi32>
    %18 = arith.sitofp %17 : vector<24x48xi32> to vector<24x48xf32>
    %c0_9 = arith.constant 0 : index
    %c0_10 = arith.constant 0 : index
    %19 = vector.load %arg7[%c0_9, %c0_10] : memref<16x64xf32, #tpu.memory_space<vmem>>, vector<16x64xf32>
    %cst = arith.constant dense<0.000000e+00> : vector<24x64xf32>
    %20 = tpu.matmul %0, %19, %cst {dimension_numbers = #tpu.dot_dimension_numbers<[1], [0], [0], [1], [0, 0, 1, 1], [], []>} : vector<24x16xf32>, vector<16x64xf32>, vector<24x64xf32> -> vector<24x64xf32>
    %21 = vector.extract_strided_slice %20 {offsets = [0, 0], sizes = [24, 32], strides = [1, 1]} : vector<24x64xf32> to vector<24x32xf32>
    %22 = vector.extract_strided_slice %20 {offsets = [0, 32], sizes = [24, 32], strides = [1, 1]} : vector<24x64xf32> to vector<24x32xf32>
    %c0_11 = arith.constant 0 : index
    %c0_12 = arith.constant 0 : index
    %23 = vector.load %arg8[%c0_11, %c0_12] : memref<8x32xf32, #tpu.memory_space<vmem>>, vector<8x32xf32>
    %cst_13 = arith.constant dense<0.000000e+00> : vector<48x32xf32>
    %24 = tpu.matmul %1, %23, %cst_13 {dimension_numbers = #tpu.dot_dimension_numbers<[1], [0], [0], [1], [0, 0, 1, 1], [], []>} : vector<48x8xf32>, vector<8x32xf32>, vector<48x32xf32> -> vector<48x32xf32>
    %c0_14 = arith.constant 0 : index
    %c0_15 = arith.constant 0 : index
    %25 = vector.load %arg9[%c0_14, %c0_15] : memref<1x32xf32, #tpu.memory_space<vmem>>, vector<1x32xf32>
    %26 = vector.broadcast %25 : vector<1x32xf32> to vector<48x32xf32>
    %27 = arith.addf %24, %26 : vector<48x32xf32>
    %cst_16 = arith.constant dense<0.000000e+00> : vector<48x32xf32>
    %28 = tpu.matmul %7, %21, %cst_16 {dimension_numbers = #tpu.dot_dimension_numbers<[1], [0], [0], [1], [0, 0, 1, 1], [], []>} : vector<48x24xf32>, vector<24x32xf32>, vector<48x32xf32> -> vector<48x32xf32>
    %cst_17 = arith.constant dense<0.000000e+00> : vector<48x32xf32>
    %29 = tpu.matmul %12, %22, %cst_17 {dimension_numbers = #tpu.dot_dimension_numbers<[1], [0], [0], [1], [0, 0, 1, 1], [], []>} : vector<48x24xf32>, vector<24x32xf32>, vector<48x32xf32> -> vector<48x32xf32>
    %30 = arith.addf %28, %29 : vector<48x32xf32>
    %31 = arith.addf %30, %27 : vector<48x32xf32>
    %cst_18 = arith.constant 0.000000e+00 : f32
    %32 = vector.broadcast %cst_18 : f32 to vector<48x32xf32>
    %33 = arith.maximumf %31, %32 : vector<48x32xf32>
    %cst_19 = arith.constant dense<0.000000e+00> : vector<24x32xf32>
    %34 = tpu.matmul %18, %33, %cst_19 {dimension_numbers = #tpu.dot_dimension_numbers<[1], [0], [0], [1], [0, 0, 1, 1], [], []>} : vector<24x48xf32>, vector<48x32xf32>, vector<24x32xf32> -> vector<24x32xf32>
    %c0_20 = arith.constant 0 : index
    %c0_21 = arith.constant 0 : index
    %35 = vector.load %arg10[%c0_20, %c0_21] : memref<16x16xf32, #tpu.memory_space<vmem>>, vector<16x16xf32>
    %cst_22 = arith.constant dense<0.000000e+00> : vector<24x16xf32>
    %36 = tpu.matmul %0, %35, %cst_22 {dimension_numbers = #tpu.dot_dimension_numbers<[1], [0], [0], [1], [0, 0, 1, 1], [], []>} : vector<24x16xf32>, vector<16x16xf32>, vector<24x16xf32> -> vector<24x16xf32>
    %c0_23 = arith.constant 0 : index
    %c0_24 = arith.constant 0 : index
    %37 = vector.load %arg11[%c0_23, %c0_24] : memref<32x16xf32, #tpu.memory_space<vmem>>, vector<32x16xf32>
    %cst_25 = arith.constant dense<0.000000e+00> : vector<24x16xf32>
    %38 = tpu.matmul %34, %37, %cst_25 {dimension_numbers = #tpu.dot_dimension_numbers<[1], [0], [0], [1], [0, 0, 1, 1], [], []>} : vector<24x32xf32>, vector<32x16xf32>, vector<24x16xf32> -> vector<24x16xf32>
    %39 = arith.addf %36, %38 : vector<24x16xf32>
    %c0_26 = arith.constant 0 : index
    %c0_27 = arith.constant 0 : index
    %40 = vector.load %arg12[%c0_26, %c0_27] : memref<1x16xf32, #tpu.memory_space<vmem>>, vector<1x16xf32>
    %41 = vector.broadcast %40 : vector<1x16xf32> to vector<24x16xf32>
    %42 = arith.addf %39, %41 : vector<24x16xf32>
    %cst_28 = arith.constant 0.000000e+00 : f32
    %43 = vector.broadcast %cst_28 : f32 to vector<24x16xf32>
    %44 = arith.maximumf %42, %43 : vector<24x16xf32>
    %c0_29 = arith.constant 0 : index
    %c0_30 = arith.constant 0 : index
    %45 = vector.load %arg13[%c0_29, %c0_30] : memref<16x64xf32, #tpu.memory_space<vmem>>, vector<16x64xf32>
    %cst_31 = arith.constant dense<0.000000e+00> : vector<24x64xf32>
    %46 = tpu.matmul %44, %45, %cst_31 {dimension_numbers = #tpu.dot_dimension_numbers<[1], [0], [0], [1], [0, 0, 1, 1], [], []>} : vector<24x16xf32>, vector<16x64xf32>, vector<24x64xf32> -> vector<24x64xf32>
    %47 = vector.extract_strided_slice %46 {offsets = [0, 0], sizes = [24, 32], strides = [1, 1]} : vector<24x64xf32> to vector<24x32xf32>
    %48 = vector.extract_strided_slice %46 {offsets = [0, 32], sizes = [24, 32], strides = [1, 1]} : vector<24x64xf32> to vector<24x32xf32>
    %c0_32 = arith.constant 0 : index
    %c0_33 = arith.constant 0 : index
    %49 = vector.load %arg14[%c0_32, %c0_33] : memref<8x32xf32, #tpu.memory_space<vmem>>, vector<8x32xf32>
    %cst_34 = arith.constant dense<0.000000e+00> : vector<48x32xf32>
    %50 = tpu.matmul %1, %49, %cst_34 {dimension_numbers = #tpu.dot_dimension_numbers<[1], [0], [0], [1], [0, 0, 1, 1], [], []>} : vector<48x8xf32>, vector<8x32xf32>, vector<48x32xf32> -> vector<48x32xf32>
    %c0_35 = arith.constant 0 : index
    %c0_36 = arith.constant 0 : index
    %51 = vector.load %arg15[%c0_35, %c0_36] : memref<1x32xf32, #tpu.memory_space<vmem>>, vector<1x32xf32>
    %52 = vector.broadcast %51 : vector<1x32xf32> to vector<48x32xf32>
    %53 = arith.addf %50, %52 : vector<48x32xf32>
    %cst_37 = arith.constant dense<0.000000e+00> : vector<48x32xf32>
    %54 = tpu.matmul %7, %47, %cst_37 {dimension_numbers = #tpu.dot_dimension_numbers<[1], [0], [0], [1], [0, 0, 1, 1], [], []>} : vector<48x24xf32>, vector<24x32xf32>, vector<48x32xf32> -> vector<48x32xf32>
    %cst_38 = arith.constant dense<0.000000e+00> : vector<48x32xf32>
    %55 = tpu.matmul %12, %48, %cst_38 {dimension_numbers = #tpu.dot_dimension_numbers<[1], [0], [0], [1], [0, 0, 1, 1], [], []>} : vector<48x24xf32>, vector<24x32xf32>, vector<48x32xf32> -> vector<48x32xf32>
    %56 = arith.addf %54, %55 : vector<48x32xf32>
    %57 = arith.addf %56, %53 : vector<48x32xf32>
    %cst_39 = arith.constant 0.000000e+00 : f32
    %58 = vector.broadcast %cst_39 : f32 to vector<48x32xf32>
    %59 = arith.maximumf %57, %58 : vector<48x32xf32>
    %cst_40 = arith.constant dense<0.000000e+00> : vector<24x32xf32>
    %60 = tpu.matmul %18, %59, %cst_40 {dimension_numbers = #tpu.dot_dimension_numbers<[1], [0], [0], [1], [0, 0, 1, 1], [], []>} : vector<24x48xf32>, vector<48x32xf32>, vector<24x32xf32> -> vector<24x32xf32>
    %c0_41 = arith.constant 0 : index
    %c0_42 = arith.constant 0 : index
    %61 = vector.load %arg16[%c0_41, %c0_42] : memref<16x16xf32, #tpu.memory_space<vmem>>, vector<16x16xf32>
    %cst_43 = arith.constant dense<0.000000e+00> : vector<24x16xf32>
    %62 = tpu.matmul %44, %61, %cst_43 {dimension_numbers = #tpu.dot_dimension_numbers<[1], [0], [0], [1], [0, 0, 1, 1], [], []>} : vector<24x16xf32>, vector<16x16xf32>, vector<24x16xf32> -> vector<24x16xf32>
    %c0_44 = arith.constant 0 : index
    %c0_45 = arith.constant 0 : index
    %63 = vector.load %arg17[%c0_44, %c0_45] : memref<32x16xf32, #tpu.memory_space<vmem>>, vector<32x16xf32>
    %cst_46 = arith.constant dense<0.000000e+00> : vector<24x16xf32>
    %64 = tpu.matmul %60, %63, %cst_46 {dimension_numbers = #tpu.dot_dimension_numbers<[1], [0], [0], [1], [0, 0, 1, 1], [], []>} : vector<24x32xf32>, vector<32x16xf32>, vector<24x16xf32> -> vector<24x16xf32>
    %65 = arith.addf %62, %64 : vector<24x16xf32>
    %c0_47 = arith.constant 0 : index
    %c0_48 = arith.constant 0 : index
    %66 = vector.load %arg18[%c0_47, %c0_48] : memref<1x16xf32, #tpu.memory_space<vmem>>, vector<1x16xf32>
    %67 = vector.broadcast %66 : vector<1x16xf32> to vector<24x16xf32>
    %68 = arith.addf %65, %67 : vector<24x16xf32>
    %cst_49 = arith.constant 0.000000e+00 : f32
    %69 = vector.broadcast %cst_49 : f32 to vector<24x16xf32>
    %70 = arith.maximumf %68, %69 : vector<24x16xf32>
    %71 = tpu.iota {dimensions = array<i32: 0>} : vector<2x24xi32>
    %c0_50 = arith.constant 0 : index
    %c0_51 = arith.constant 0 : index
    %72 = vector.load %arg3[%c0_50, %c0_51] : memref<1x24xi32, #tpu.memory_space<vmem>>, vector<1x24xi32>
    %73 = vector.broadcast %72 : vector<1x24xi32> to vector<2x24xi32>
    %74 = arith.cmpi eq, %71, %73 : vector<2x24xi32>
    %75 = arith.extui %74 : vector<2x24xi1> to vector<2x24xi32>
    %76 = arith.sitofp %75 : vector<2x24xi32> to vector<2x24xf32>
    %cst_52 = arith.constant dense<0.000000e+00> : vector<2x16xf32>
    %77 = tpu.matmul %76, %70, %cst_52 {dimension_numbers = #tpu.dot_dimension_numbers<[1], [0], [0], [1], [0, 0, 1, 1], [], []>} : vector<2x24xf32>, vector<24x16xf32>, vector<2x16xf32> -> vector<2x16xf32>
    %cst_53 = arith.constant dense<0.000000e+00> : vector<2xf32>
    %78 = vector.multi_reduction <add>, %76, %cst_53 [1] : vector<2x24xf32> to vector<2xf32>
    %79 = vector.shape_cast %78 : vector<2xf32> to vector<2x1xf32>
    %cst_54 = arith.constant 1.000000e+00 : f32
    %80 = vector.broadcast %cst_54 : f32 to vector<2x1xf32>
    %81 = arith.maximumf %79, %80 : vector<2x1xf32>
    %82 = vector.broadcast %81 : vector<2x1xf32> to vector<2x16xf32>
    %83 = arith.divf %77, %82 : vector<2x16xf32>
    %c0_55 = arith.constant 0 : index
    %c0_56 = arith.constant 0 : index
    %84 = vector.load %arg19[%c0_55, %c0_56] : memref<16x128xf32, #tpu.memory_space<vmem>>, vector<16x128xf32>
    %cst_57 = arith.constant dense<0.000000e+00> : vector<2x128xf32>
    %85 = tpu.matmul %83, %84, %cst_57 {dimension_numbers = #tpu.dot_dimension_numbers<[1], [0], [0], [1], [0, 0, 1, 1], [], []>} : vector<2x16xf32>, vector<16x128xf32>, vector<2x128xf32> -> vector<2x128xf32>
    %c0_58 = arith.constant 0 : index
    %c0_59 = arith.constant 0 : index
    %86 = vector.load %arg20[%c0_58, %c0_59] : memref<1x128xf32, #tpu.memory_space<vmem>>, vector<1x128xf32>
    %87 = vector.broadcast %86 : vector<1x128xf32> to vector<2x128xf32>
    %88 = arith.addf %85, %87 : vector<2x128xf32>
    %cst_60 = arith.constant 0.000000e+00 : f32
    %89 = vector.broadcast %cst_60 : f32 to vector<2x128xf32>
    %90 = arith.maximumf %88, %89 : vector<2x128xf32>
    %c0_61 = arith.constant 0 : index
    %c0_62 = arith.constant 0 : index
    %91 = vector.load %arg21[%c0_61, %c0_62] : memref<128x128xf32, #tpu.memory_space<vmem>>, vector<128x128xf32>
    %cst_63 = arith.constant dense<0.000000e+00> : vector<2x128xf32>
    %92 = tpu.matmul %90, %91, %cst_63 {dimension_numbers = #tpu.dot_dimension_numbers<[1], [0], [0], [1], [0, 0, 1, 1], [], []>} : vector<2x128xf32>, vector<128x128xf32>, vector<2x128xf32> -> vector<2x128xf32>
    %c0_64 = arith.constant 0 : index
    %c0_65 = arith.constant 0 : index
    %93 = vector.load %arg22[%c0_64, %c0_65] : memref<1x128xf32, #tpu.memory_space<vmem>>, vector<1x128xf32>
    %94 = vector.broadcast %93 : vector<1x128xf32> to vector<2x128xf32>
    %95 = arith.addf %92, %94 : vector<2x128xf32>
    %cst_66 = arith.constant 0.000000e+00 : f32
    %96 = vector.broadcast %cst_66 : f32 to vector<2x128xf32>
    %97 = arith.maximumf %95, %96 : vector<2x128xf32>
    %c0_67 = arith.constant 0 : index
    %c0_68 = arith.constant 0 : index
    %98 = vector.load %arg23[%c0_67, %c0_68] : memref<128x4xf32, #tpu.memory_space<vmem>>, vector<128x4xf32>
    %cst_69 = arith.constant dense<0.000000e+00> : vector<2x4xf32>
    %99 = tpu.matmul %97, %98, %cst_69 {dimension_numbers = #tpu.dot_dimension_numbers<[1], [0], [0], [1], [0, 0, 1, 1], [], []>} : vector<2x128xf32>, vector<128x4xf32>, vector<2x4xf32> -> vector<2x4xf32>
    %c0_70 = arith.constant 0 : index
    %c0_71 = arith.constant 0 : index
    %100 = vector.load %arg24[%c0_70, %c0_71] : memref<1x4xf32, #tpu.memory_space<vmem>>, vector<1x4xf32>
    %101 = vector.broadcast %100 : vector<1x4xf32> to vector<2x4xf32>
    %102 = arith.addf %99, %101 : vector<2x4xf32>
    %c0_72 = arith.constant 0 : index
    %c0_73 = arith.constant 0 : index
    %103 = vector.load %arg25[%c0_72, %c0_73] : memref<2x4xf32, #tpu.memory_space<vmem>>, vector<2x4xf32>
    tpu.vector_store %arg25[%c0_72, %c0_73], %102 {strides = array<i32>} : memref<2x4xf32, #tpu.memory_space<vmem>>, vector<2x4xf32>,
    return
  }
  func.func @transform_0(%arg0: i32) -> (i32, i32) {
    %c0_i32 = arith.constant 0 : i32
    %c0_i32_0 = arith.constant 0 : i32
    %c0_i32_1 = arith.constant 0 : i32
    return %c0_i32, %c0_i32_0 : i32, i32
  }
  func.func @transform_1(%arg0: i32) -> (i32, i32) {
    %c0_i32 = arith.constant 0 : i32
    %c0_i32_0 = arith.constant 0 : i32
    %c0_i32_1 = arith.constant 0 : i32
    return %c0_i32, %c0_i32_0 : i32, i32
  }
  func.func @transform_2(%arg0: i32) -> (i32, i32) {
    %c0_i32 = arith.constant 0 : i32
    %c0_i32_0 = arith.constant 0 : i32
    %c0_i32_1 = arith.constant 0 : i32
    return %c0_i32, %c0_i32_0 : i32, i32
  }
  func.func @transform_3(%arg0: i32) -> (i32, i32) {
    %c0_i32 = arith.constant 0 : i32
    %c0_i32_0 = arith.constant 0 : i32
    %c0_i32_1 = arith.constant 0 : i32
    return %c0_i32, %c0_i32_0 : i32, i32
  }
  func.func @transform_4(%arg0: i32) -> (i32, i32) {
    %c0_i32 = arith.constant 0 : i32
    %c0_i32_0 = arith.constant 0 : i32
    %c0_i32_1 = arith.constant 0 : i32
    return %c0_i32, %c0_i32_0 : i32, i32
  }
  func.func @transform_5(%arg0: i32) -> (i32, i32) {
    %c0_i32 = arith.constant 0 : i32
    %c0_i32_0 = arith.constant 0 : i32
    %c0_i32_1 = arith.constant 0 : i32
    return %c0_i32, %c0_i32_0 : i32, i32
  }
  func.func @transform_6(%arg0: i32) -> (i32, i32) {
    %c0_i32 = arith.constant 0 : i32
    %c0_i32_0 = arith.constant 0 : i32
    %c0_i32_1 = arith.constant 0 : i32
    return %c0_i32, %c0_i32_0 : i32, i32
  }
  func.func @transform_7(%arg0: i32) -> (i32, i32) {
    %c0_i32 = arith.constant 0 : i32
    %c0_i32_0 = arith.constant 0 : i32
    %c0_i32_1 = arith.constant 0 : i32
    return %c0_i32, %c0_i32_0 : i32, i32
  }
  func.func @transform_8(%arg0: i32) -> (i32, i32) {
    %c0_i32 = arith.constant 0 : i32
    %c0_i32_0 = arith.constant 0 : i32
    %c0_i32_1 = arith.constant 0 : i32
    return %c0_i32, %c0_i32_0 : i32, i32
  }
  func.func @transform_9(%arg0: i32) -> (i32, i32) {
    %c0_i32 = arith.constant 0 : i32
    %c0_i32_0 = arith.constant 0 : i32
    %c0_i32_1 = arith.constant 0 : i32
    return %c0_i32, %c0_i32_0 : i32, i32
  }
  func.func @transform_10(%arg0: i32) -> (i32, i32) {
    %c0_i32 = arith.constant 0 : i32
    %c0_i32_0 = arith.constant 0 : i32
    %c0_i32_1 = arith.constant 0 : i32
    return %c0_i32, %c0_i32_0 : i32, i32
  }
  func.func @transform_11(%arg0: i32) -> (i32, i32) {
    %c0_i32 = arith.constant 0 : i32
    %c0_i32_0 = arith.constant 0 : i32
    %c0_i32_1 = arith.constant 0 : i32
    return %c0_i32, %c0_i32_0 : i32, i32
  }
  func.func @transform_12(%arg0: i32) -> (i32, i32) {
    %c0_i32 = arith.constant 0 : i32
    %c0_i32_0 = arith.constant 0 : i32
    %c0_i32_1 = arith.constant 0 : i32
    return %c0_i32, %c0_i32_0 : i32, i32
  }
  func.func @transform_13(%arg0: i32) -> (i32, i32) {
    %c0_i32 = arith.constant 0 : i32
    %c0_i32_0 = arith.constant 0 : i32
    %c0_i32_1 = arith.constant 0 : i32
    return %c0_i32, %c0_i32_0 : i32, i32
  }
  func.func @transform_14(%arg0: i32) -> (i32, i32) {
    %c0_i32 = arith.constant 0 : i32
    %c0_i32_0 = arith.constant 0 : i32
    %c0_i32_1 = arith.constant 0 : i32
    return %c0_i32, %c0_i32_0 : i32, i32
  }
  func.func @transform_15(%arg0: i32) -> (i32, i32) {
    %c0_i32 = arith.constant 0 : i32
    %c0_i32_0 = arith.constant 0 : i32
    %c0_i32_1 = arith.constant 0 : i32
    return %c0_i32, %c0_i32_0 : i32, i32
  }
  func.func @transform_16(%arg0: i32) -> (i32, i32) {
    %c0_i32 = arith.constant 0 : i32
    %c0_i32_0 = arith.constant 0 : i32
    %c0_i32_1 = arith.constant 0 : i32
    return %c0_i32, %c0_i32_0 : i32, i32
  }
  func.func @transform_17(%arg0: i32) -> (i32, i32) {
    %c0_i32 = arith.constant 0 : i32
    %c0_i32_0 = arith.constant 0 : i32
    %c0_i32_1 = arith.constant 0 : i32
    return %c0_i32, %c0_i32_0 : i32, i32
  }
  func.func @transform_18(%arg0: i32) -> (i32, i32) {
    %c0_i32 = arith.constant 0 : i32
    %c0_i32_0 = arith.constant 0 : i32
    %c0_i32_1 = arith.constant 0 : i32
    return %c0_i32, %c0_i32_0 : i32, i32
  }
  func.func @transform_19(%arg0: i32) -> (i32, i32) {
    %c0_i32 = arith.constant 0 : i32
    %c0_i32_0 = arith.constant 0 : i32
    %c0_i32_1 = arith.constant 0 : i32
    return %c0_i32, %c0_i32_0 : i32, i32
  }
  func.func @transform_20(%arg0: i32) -> (i32, i32) {
    %c0_i32 = arith.constant 0 : i32
    %c0_i32_0 = arith.constant 0 : i32
    %c0_i32_1 = arith.constant 0 : i32
    return %c0_i32, %c0_i32_0 : i32, i32
  }
  func.func @transform_21(%arg0: i32) -> (i32, i32) {
    %c0_i32 = arith.constant 0 : i32
    %c0_i32_0 = arith.constant 0 : i32
    %c0_i32_1 = arith.constant 0 : i32
    return %c0_i32, %c0_i32_0 : i32, i32
  }
  func.func @transform_22(%arg0: i32) -> (i32, i32) {
    %c0_i32 = arith.constant 0 : i32
    %c0_i32_0 = arith.constant 0 : i32
    %c0_i32_1 = arith.constant 0 : i32
    return %c0_i32, %c0_i32_0 : i32, i32
  }
  func.func @transform_23(%arg0: i32) -> (i32, i32) {
    %c0_i32 = arith.constant 0 : i32
    %c0_i32_0 = arith.constant 0 : i32
    %c0_i32_1 = arith.constant 0 : i32
    return %c0_i32, %c0_i32_0 : i32, i32
  }
  func.func @transform_24(%arg0: i32) -> (i32, i32) {
    %c0_i32 = arith.constant 0 : i32
    %c0_i32_0 = arith.constant 0 : i32
    %c0_i32_1 = arith.constant 0 : i32
    return %c0_i32, %c0_i32_0 : i32, i32
  }
}

</mosaic_0001>

<llo_original>
// kernel: pmhci_network03_forward.1
$region0: #{pmhci_network03_forward.1}
  #allocation0 [shape = 'u32[]', space=smem, size = 0x4, offset = 0x4, fixed_abs, tag = 'smem constant byte address 0x4 - core index']
  #allocation1 [shape = 'u32[72,128]{1,0:T(1,128)}', space=vmem, size = 0x9000, scoped, tag = 'internal scratch']
  %s0 = inlined_call_operand.vmem [shape: f32[24,16], index: 0, kind: input, shape index: {}]
  %s1 = inlined_call_operand.vmem [shape: f32[48,8], index: 1, kind: input, shape index: {}]
  %s2 = inlined_call_operand.vmem [shape: s32[1,24], index: 2, kind: input, shape index: {}]
  %s3 = inlined_call_operand.vmem [shape: s32[48,1], index: 3, kind: input, shape index: {}]
  %s4 = inlined_call_operand.vmem [shape: s32[48,1], index: 4, kind: input, shape index: {}]
  %s5 = inlined_call_operand.vmem [shape: s32[1,48], index: 5, kind: input, shape index: {}]
  %s6 = inlined_call_operand.vmem [shape: f32[16,64], index: 6, kind: input, shape index: {}]
  %s7 = inlined_call_operand.vmem [shape: f32[8,32], index: 7, kind: input, shape index: {}]
  %s8 = inlined_call_operand.vmem [shape: f32[1,32], index: 8, kind: input, shape index: {}]
  %s9 = inlined_call_operand.vmem [shape: f32[16,16], index: 9, kind: input, shape index: {}]
  %s10 = inlined_call_operand.vmem [shape: f32[32,16], index: 10, kind: input, shape index: {}]
  %s11 = inlined_call_operand.vmem [shape: f32[1,16], index: 11, kind: input, shape index: {}]
  %s12 = inlined_call_operand.vmem [shape: f32[16,64], index: 12, kind: input, shape index: {}]
  %s13 = inlined_call_operand.vmem [shape: f32[8,32], index: 13, kind: input, shape index: {}]
  %s14 = inlined_call_operand.vmem [shape: f32[1,32], index: 14, kind: input, shape index: {}]
  %s15 = inlined_call_operand.vmem [shape: f32[16,16], index: 15, kind: input, shape index: {}]
  %s16 = inlined_call_operand.vmem [shape: f32[32,16], index: 16, kind: input, shape index: {}]
  %s17 = inlined_call_operand.vmem [shape: f32[1,16], index: 17, kind: input, shape index: {}]
  %s18 = inlined_call_operand.vmem [shape: f32[16,128], index: 18, kind: input, shape index: {}]
  %s19 = inlined_call_operand.vmem [shape: f32[1,128], index: 19, kind: input, shape index: {}]
  %s20 = inlined_call_operand.vmem [shape: f32[128,128], index: 20, kind: input, shape index: {}]
  %s21 = inlined_call_operand.vmem [shape: f32[1,128], index: 21, kind: input, shape index: {}]
  %s22 = inlined_call_operand.vmem [shape: f32[128,4], index: 22, kind: input, shape index: {}]
  %s23 = inlined_call_operand.vmem [shape: f32[1,4], index: 23, kind: input, shape index: {}]
  %s24 = inlined_call_operand.hbm [shape: f32[2,4], index: 24, kind: output, shape index: {}]
  %s25 = sld [smem:[#allocation0]]
  $region106: #{pmhci_network03_forward.1} parent=0
    _
  %s27 = ssub.s32 1, %s25
  %s28 = scalar_select 0, %s27, %s25
  $region1: #{pmhci_network03_forward.1} parent=0
    #allocation2 [shape = 'u8[1024]{0}', space=vmem, size = 0x400, scoped, tag = 'output window, operand 0, single buffered']
    #allocation3 [shape = 's32[1]{0}', space=sflag, size = 0x4, scoped, tag = 'scoped memory for pmhci_network03_forward.1']
    %29 = vsyncpa [#allocation3], 0
    // Predicated region
    $region2: #{pmhci_network03_forward.1} parent=1 // pred_check
      _
    $region3: #{pmhci_network03_forward.1} parent=1 // pred_check_branch
      %31 = sbr.rel (0) target = $region5
    $region4: #{pmhci_network03_forward.1} parent=1 // pred_region
      _
    $region5: #{pmhci_network03_forward.1} parent=1 // pred_fallthru
      _
    // Predicated region
    $region6: #{pmhci_network03_forward.1} parent=1 // pred_check
      _
    $region7: #{pmhci_network03_forward.1} parent=1 // pred_check_branch
      %33 = sbr.rel (0) target = $region9
    $region8: #{pmhci_network03_forward.1} parent=1 // pred_region
      _
    $region9: #{pmhci_network03_forward.1} parent=1 // pred_fallthru
      _
    // Predicated region
    $region10: #{pmhci_network03_forward.1} parent=1 // pred_check
      _
    $region11: #{pmhci_network03_forward.1} parent=1 // pred_check_branch
      %35 = sbr.rel (0) target = $region13
    $region12: #{pmhci_network03_forward.1} parent=1 // pred_region
      _
    $region13: #{pmhci_network03_forward.1} parent=1 // pred_fallthru
      _
    // Predicated region
    $region14: #{pmhci_network03_forward.1} parent=1 // pred_check
      _
    $region15: #{pmhci_network03_forward.1} parent=1 // pred_check_branch
      %37 = sbr.rel (0) target = $region17
    $region16: #{pmhci_network03_forward.1} parent=1 // pred_region
      _
    $region17: #{pmhci_network03_forward.1} parent=1 // pred_fallthru
      _
    // Predicated region
    $region18: #{pmhci_network03_forward.1} parent=1 // pred_check
      _
    $region19: #{pmhci_network03_forward.1} parent=1 // pred_check_branch
      %39 = sbr.rel (0) target = $region21
    $region20: #{pmhci_network03_forward.1} parent=1 // pred_region
      _
    $region21: #{pmhci_network03_forward.1} parent=1 // pred_fallthru
      _
    // Predicated region
    $region22: #{pmhci_network03_forward.1} parent=1 // pred_check
      _
    $region23: #{pmhci_network03_forward.1} parent=1 // pred_check_branch
      %41 = sbr.rel (0) target = $region25
    $region24: #{pmhci_network03_forward.1} parent=1 // pred_region
      _
    $region25: #{pmhci_network03_forward.1} parent=1 // pred_fallthru
      _
    // Predicated region
    $region26: #{pmhci_network03_forward.1} parent=1 // pred_check
      _
    $region27: #{pmhci_network03_forward.1} parent=1 // pred_check_branch
      %43 = sbr.rel (0) target = $region29
    $region28: #{pmhci_network03_forward.1} parent=1 // pred_region
      _
    $region29: #{pmhci_network03_forward.1} parent=1 // pred_fallthru
      _
    // Predicated region
    $region30: #{pmhci_network03_forward.1} parent=1 // pred_check
      _
    $region31: #{pmhci_network03_forward.1} parent=1 // pred_check_branch
      %45 = sbr.rel (0) target = $region33
    $region32: #{pmhci_network03_forward.1} parent=1 // pred_region
      _
    $region33: #{pmhci_network03_forward.1} parent=1 // pred_fallthru
      _
    // Predicated region
    $region34: #{pmhci_network03_forward.1} parent=1 // pred_check
      _
    $region35: #{pmhci_network03_forward.1} parent=1 // pred_check_branch
      %47 = sbr.rel (0) target = $region37
    $region36: #{pmhci_network03_forward.1} parent=1 // pred_region
      _
    $region37: #{pmhci_network03_forward.1} parent=1 // pred_fallthru
      _
    // Predicated region
    $region38: #{pmhci_network03_forward.1} parent=1 // pred_check
      _
    $region39: #{pmhci_network03_forward.1} parent=1 // pred_check_branch
      %49 = sbr.rel (0) target = $region41
    $region40: #{pmhci_network03_forward.1} parent=1 // pred_region
      _
    $region41: #{pmhci_network03_forward.1} parent=1 // pred_fallthru
      _
    // Predicated region
    $region42: #{pmhci_network03_forward.1} parent=1 // pred_check
      _
    $region43: #{pmhci_network03_forward.1} parent=1 // pred_check_branch
      %51 = sbr.rel (0) target = $region45
    $region44: #{pmhci_network03_forward.1} parent=1 // pred_region
      _
    $region45: #{pmhci_network03_forward.1} parent=1 // pred_fallthru
      _
    // Predicated region
    $region46: #{pmhci_network03_forward.1} parent=1 // pred_check
      _
    $region47: #{pmhci_network03_forward.1} parent=1 // pred_check_branch
      %53 = sbr.rel (0) target = $region49
    $region48: #{pmhci_network03_forward.1} parent=1 // pred_region
      _
    $region49: #{pmhci_network03_forward.1} parent=1 // pred_fallthru
      _
    // Predicated region
    $region50: #{pmhci_network03_forward.1} parent=1 // pred_check
      _
    $region51: #{pmhci_network03_forward.1} parent=1 // pred_check_branch
      %55 = sbr.rel (0) target = $region53
    $region52: #{pmhci_network03_forward.1} parent=1 // pred_region
      _
    $region53: #{pmhci_network03_forward.1} parent=1 // pred_fallthru
      _
    // Predicated region
    $region54: #{pmhci_network03_forward.1} parent=1 // pred_check
      _
    $region55: #{pmhci_network03_forward.1} parent=1 // pred_check_branch
      %57 = sbr.rel (0) target = $region57
    $region56: #{pmhci_network03_forward.1} parent=1 // pred_region
      _
    $region57: #{pmhci_network03_forward.1} parent=1 // pred_fallthru
      _
    // Predicated region
    $region58: #{pmhci_network03_forward.1} parent=1 // pred_check
      _
    $region59: #{pmhci_network03_forward.1} parent=1 // pred_check_branch
      %59 = sbr.rel (0) target = $region61
    $region60: #{pmhci_network03_forward.1} parent=1 // pred_region
      _
    $region61: #{pmhci_network03_forward.1} parent=1 // pred_fallthru
      _
    // Predicated region
    $region62: #{pmhci_network03_forward.1} parent=1 // pred_check
      _
    $region63: #{pmhci_network03_forward.1} parent=1 // pred_check_branch
      %61 = sbr.rel (0) target = $region65
    $region64: #{pmhci_network03_forward.1} parent=1 // pred_region
      _
    $region65: #{pmhci_network03_forward.1} parent=1 // pred_fallthru
      _
    // Predicated region
    $region66: #{pmhci_network03_forward.1} parent=1 // pred_check
      _
    $region67: #{pmhci_network03_forward.1} parent=1 // pred_check_branch
      %63 = sbr.rel (0) target = $region69
    $region68: #{pmhci_network03_forward.1} parent=1 // pred_region
      _
    $region69: #{pmhci_network03_forward.1} parent=1 // pred_fallthru
      _
    // Predicated region
    $region70: #{pmhci_network03_forward.1} parent=1 // pred_check
      _
    $region71: #{pmhci_network03_forward.1} parent=1 // pred_check_branch
      %65 = sbr.rel (0) target = $region73
    $region72: #{pmhci_network03_forward.1} parent=1 // pred_region
      _
    $region73: #{pmhci_network03_forward.1} parent=1 // pred_fallthru
      _
    // Predicated region
    $region74: #{pmhci_network03_forward.1} parent=1 // pred_check
      _
    $region75: #{pmhci_network03_forward.1} parent=1 // pred_check_branch
      %67 = sbr.rel (0) target = $region77
    $region76: #{pmhci_network03_forward.1} parent=1 // pred_region
      _
    $region77: #{pmhci_network03_forward.1} parent=1 // pred_fallthru
      _
    // Predicated region
    $region78: #{pmhci_network03_forward.1} parent=1 // pred_check
      _
    $region79: #{pmhci_network03_forward.1} parent=1 // pred_check_branch
      %69 = sbr.rel (0) target = $region81
    $region80: #{pmhci_network03_forward.1} parent=1 // pred_region
      _
    $region81: #{pmhci_network03_forward.1} parent=1 // pred_fallthru
      _
    // Predicated region
    $region82: #{pmhci_network03_forward.1} parent=1 // pred_check
      _
    $region83: #{pmhci_network03_forward.1} parent=1 // pred_check_branch
      %71 = sbr.rel (0) target = $region85
    $region84: #{pmhci_network03_forward.1} parent=1 // pred_region
      _
    $region85: #{pmhci_network03_forward.1} parent=1 // pred_fallthru
      _
    // Predicated region
    $region86: #{pmhci_network03_forward.1} parent=1 // pred_check
      _
    $region87: #{pmhci_network03_forward.1} parent=1 // pred_check_branch
      %73 = sbr.rel (0) target = $region89
    $region88: #{pmhci_network03_forward.1} parent=1 // pred_region
      _
    $region89: #{pmhci_network03_forward.1} parent=1 // pred_fallthru
      _
    // Predicated region
    $region90: #{pmhci_network03_forward.1} parent=1 // pred_check
      _
    $region91: #{pmhci_network03_forward.1} parent=1 // pred_check_branch
      %75 = sbr.rel (0) target = $region93
    $region92: #{pmhci_network03_forward.1} parent=1 // pred_region
      _
    $region93: #{pmhci_network03_forward.1} parent=1 // pred_fallthru
      _
    // Predicated region
    $region94: #{pmhci_network03_forward.1} parent=1 // pred_check
      _
    $region95: #{pmhci_network03_forward.1} parent=1 // pred_check_branch
      %77 = sbr.rel (0) target = $region97
    $region96: #{pmhci_network03_forward.1} parent=1 // pred_region
      _
    $region97: #{pmhci_network03_forward.1} parent=1 // pred_fallthru
      _
    %v78 = vld [vmem:[%s0] sm:$0xff]
    %v79 = vld [vmem:[%s0 + $0x8] sm:$0xff]
    %v80 = vld [vmem:[%s0 + $0x10] sm:$0xff]
    %v81 = vld [vmem:[%s1] sm:$0xff]
    %v82 = vld [vmem:[%s1 + $0x8] sm:$0xff]
    %v83 = vld [vmem:[%s1 + $0x10] sm:$0xff]
    %v84 = vld [vmem:[%s1 + $0x18] sm:$0xff]
    %v85 = vld [vmem:[%s1 + $0x20] sm:$0xff]
    %v86 = vld [vmem:[%s1 + $0x28] sm:$0xff]
    %v87 = vlaneseq
    %v88 = vand.u32 %v87, 127
    %v89 = vld [vmem:[%s3] sm:$0xff]
    %v90 = vld [vmem:[%s3 + $0x8] sm:$0xff]
    %v91 = vld [vmem:[%s3 + $0x10] sm:$0xff]
    %v92 = vld [vmem:[%s3 + $0x18] sm:$0xff]
    %v93 = vld [vmem:[%s3 + $0x20] sm:$0xff]
    %v94 = vld [vmem:[%s3 + $0x28] sm:$0xff]
    %95 = vset.pattern.permute.xlu0 0
    %96 = vperm.xlu0 %95, %v89
    %v97 = vpop.permute.xlu0 %96
    %98 = vset.pattern.permute.xlu0 0
    %99 = vperm.xlu0 %98, %v90
    %v100 = vpop.permute.xlu0 %99
    %101 = vset.pattern.permute.xlu0 0
    %102 = vperm.xlu0 %101, %v91
    %v103 = vpop.permute.xlu0 %102
    %104 = vset.pattern.permute.xlu0 0
    %105 = vperm.xlu0 %104, %v92
    %v106 = vpop.permute.xlu0 %105
    %107 = vset.pattern.permute.xlu0 0
    %108 = vperm.xlu0 %107, %v93
    %v109 = vpop.permute.xlu0 %108
    %110 = vset.pattern.permute.xlu0 0
    %111 = vperm.xlu0 %110, %v94
    %v112 = vpop.permute.xlu0 %111
    %vm113 = vcmp.eq.s32.totalorder %v88, %v97
    %vm114 = vcmp.eq.s32.totalorder %v88, %v100
    %vm115 = vcmp.eq.s32.totalorder %v88, %v103
    %vm116 = vcmp.eq.s32.totalorder %v88, %v106
    %vm117 = vcmp.eq.s32.totalorder %v88, %v109
    %vm118 = vcmp.eq.s32.totalorder %v88, %v112
    %v119 = vsel %vm113, 1, 0
    %v120 = vsel %vm114, 1, 0
    %v121 = vsel %vm115, 1, 0
    %v122 = vsel %vm116, 1, 0
    %v123 = vsel %vm117, 1, 0
    %v124 = vsel %vm118, 1, 0
    %v125 = vcvt.s32.f32 %v119
    %v126 = vcvt.s32.f32 %v120
    %v127 = vcvt.s32.f32 %v121
    %v128 = vcvt.s32.f32 %v122
    %v129 = vcvt.s32.f32 %v123
    %v130 = vcvt.s32.f32 %v124
    %v131 = vld [vmem:[%s4] sm:$0xff]
    %v132 = vld [vmem:[%s4 + $0x8] sm:$0xff]
    %v133 = vld [vmem:[%s4 + $0x10] sm:$0xff]
    %v134 = vld [vmem:[%s4 + $0x18] sm:$0xff]
    %v135 = vld [vmem:[%s4 + $0x20] sm:$0xff]
    %v136 = vld [vmem:[%s4 + $0x28] sm:$0xff]
    %137 = vset.pattern.permute.xlu0 0
    %138 = vperm.xlu0 %137, %v131
    %v139 = vpop.permute.xlu0 %138
    %140 = vset.pattern.permute.xlu0 0
    %141 = vperm.xlu0 %140, %v132
    %v142 = vpop.permute.xlu0 %141
    %143 = vset.pattern.permute.xlu0 0
    %144 = vperm.xlu0 %143, %v133
    %v145 = vpop.permute.xlu0 %144
    %146 = vset.pattern.permute.xlu0 0
    %147 = vperm.xlu0 %146, %v134
    %v148 = vpop.permute.xlu0 %147
    %149 = vset.pattern.permute.xlu0 0
    %150 = vperm.xlu0 %149, %v135
    %v151 = vpop.permute.xlu0 %150
    %152 = vset.pattern.permute.xlu0 0
    %153 = vperm.xlu0 %152, %v136
    %v154 = vpop.permute.xlu0 %153
    %vm155 = vcmp.eq.s32.totalorder %v88, %v139
    %vm156 = vcmp.eq.s32.totalorder %v88, %v142
    %vm157 = vcmp.eq.s32.totalorder %v88, %v145
    %vm158 = vcmp.eq.s32.totalorder %v88, %v148
    %vm159 = vcmp.eq.s32.totalorder %v88, %v151
    %vm160 = vcmp.eq.s32.totalorder %v88, %v154
    %v161 = vsel %vm155, 1, 0
    %v162 = vsel %vm156, 1, 0
    %v163 = vsel %vm157, 1, 0
    %v164 = vsel %vm158, 1, 0
    %v165 = vsel %vm159, 1, 0
    %v166 = vsel %vm160, 1, 0
    %v167 = vcvt.s32.f32 %v161
    %v168 = vcvt.s32.f32 %v162
    %v169 = vcvt.s32.f32 %v163
    %v170 = vcvt.s32.f32 %v164
    %v171 = vcvt.s32.f32 %v165
    %v172 = vcvt.s32.f32 %v166
    %v173 = vlaneseq
    %v174 = vshrl.u32 %v173, 7
    %v175 = vadd.s32 %v174, 8
    %v176 = vadd.s32 %v174, 16
    %v177 = vld [vmem:[%s5] sm:$0x1]
    %v178 = vperm.slane %v177, 0
    %vm179 = vcmp.eq.s32.totalorder %v174, %v178
    %vm180 = vcmp.eq.s32.totalorder %v175, %v178
    %vm181 = vcmp.eq.s32.totalorder %v176, %v178
    %v182 = vsel %vm179, 1, 0
    %v183 = vsel %vm180, 1, 0
    %v184 = vsel %vm181, 1, 0
    %v185 = vcvt.s32.f32 %v182
    %v186 = vcvt.s32.f32 %v183
    %v187 = vcvt.s32.f32 %v184
    %v188 = vld [vmem:[%s6] sm:$0xff]
    %v189 = vld [vmem:[%s6 + $0x8] sm:$0xff]
    %vm190 = vcmask 130048
    %v192 = vsel %vm190, %v78, 0
    %v195 = vsel %vm190, %v79, 0
    %v198 = vsel %vm190, %v80, 0
    %200 = vmatpush.msra.mxu0 0.0
    %201 = vmatpush.msra.mxu0 0.0
    %202 = vmatpush.msra.mxu0 0.0
    %203 = vmatpush.msra.mxu0 0.0
    %204 = vmatpush.msra.mxu0 0.0
    %205 = vmatpush.msra.mxu0 0.0
    %206 = vmatpush.msra.mxu0 0.0
    %207 = vmatpush.msra.mxu0 0.0
    %208 = vmatpush.msra.mxu0 0.0
    %209 = vmatpush.msra.mxu0 0.0
    %210 = vmatpush.msra.mxu0 0.0
    %211 = vmatpush.msra.mxu0 0.0
    %212 = vmatpush.msra.mxu0 0.0
    %213 = vmatpush.msra.mxu0 0.0
    %214 = vmatpush.msra.mxu0 %v189
    %215 = vmatpush.msra.mxu0 %v188
    %216 = vmatmul.f32.gmra.mxu0 %v192
    %v217 = vpop.f32.mrf.mxu0
    %v218 = vadd.f32 0.0, %v217
    %219 = vmatmul.f32.gmra.mxu0 %v195
    %v220 = vpop.f32.mrf.mxu0
    %v221 = vadd.f32 0.0, %v220
    %222 = vmatmul.f32.gmra.mxu0 %v198
    %v223 = vpop.f32.mrf.mxu0
    %v224 = vadd.f32 0.0, %v223
    %225 = vdwg.mxu0
    %v226 = vld [vmem:[%s7] sm:$0xff]
    %v227 = vld [vmem:[%s8] sm:$0x1]
    %v229 = vperm.slane %v227, 0
    %vm231 = vcmask 64512
    %v233 = vsel %vm231, %v81, 0
    %v236 = vsel %vm231, %v82, 0
    %v239 = vsel %vm231, %v83, 0
    %v242 = vsel %vm231, %v84, 0
    %v245 = vsel %vm231, %v85, 0
    %v248 = vsel %vm231, %v86, 0
    %250 = vmatpush.msra.mxu0 0.0
    %251 = vmatpush.msra.mxu0 0.0
    %252 = vmatpush.msra.mxu0 0.0
    %253 = vmatpush.msra.mxu0 0.0
    %254 = vmatpush.msra.mxu0 0.0
    %255 = vmatpush.msra.mxu0 0.0
    %256 = vmatpush.msra.mxu0 0.0
    %257 = vmatpush.msra.mxu0 0.0
    %258 = vmatpush.msra.mxu0 0.0
    %259 = vmatpush.msra.mxu0 0.0
    %260 = vmatpush.msra.mxu0 0.0
    %261 = vmatpush.msra.mxu0 0.0
    %262 = vmatpush.msra.mxu0 0.0
    %263 = vmatpush.msra.mxu0 0.0
    %264 = vmatpush.msra.mxu0 0.0
    %265 = vmatpush.msra.mxu0 %v226
    %266 = vmatmul.f32.gmra.mxu0 %v233
    %v267 = vpop.f32.mrf.mxu0
    %v268 = vadd.f32 %v229, %v267
    %269 = vmatmul.f32.gmra.mxu0 %v236
    %v270 = vpop.f32.mrf.mxu0
    %v271 = vadd.f32 %v229, %v270
    %272 = vmatmul.f32.gmra.mxu0 %v239
    %v273 = vpop.f32.mrf.mxu0
    %v274 = vadd.f32 %v229, %v273
    %275 = vmatmul.f32.gmra.mxu0 %v242
    %v276 = vpop.f32.mrf.mxu0
    %v277 = vadd.f32 %v229, %v276
    %278 = vmatmul.f32.gmra.mxu0 %v245
    %v279 = vpop.f32.mrf.mxu0
    %v280 = vadd.f32 %v229, %v279
    %281 = vmatmul.f32.gmra.mxu0 %v248
    %v282 = vpop.f32.mrf.mxu0
    %v283 = vadd.f32 %v229, %v282
    %284 = vdwg.mxu0
    %288 = vrot.lane.b32.xlu0 %v218, 96
    %v289 = vpop.permute.xlu0 %288
    %290 = vrot.lane.b32.xlu0 %v221, 96
    %v291 = vpop.permute.xlu0 %290
    %292 = vrot.lane.b32.xlu0 %v224, 96
    %v293 = vpop.permute.xlu0 %292
    %vm297 = vcmask 195584
    %v299 = vsel %vm297, %v167, 0
    %v302 = vsel %vm297, %v168, 0
    %v305 = vsel %vm297, %v169, 0
    %v308 = vsel %vm297, %v170, 0
    %v311 = vsel %vm297, %v171, 0
    %v314 = vsel %vm297, %v172, 0
    %316 = vmatpush.msra.mxu0 0.0
    %317 = vmatpush.msra.mxu0 0.0
    %318 = vmatpush.msra.mxu0 0.0
    %319 = vmatpush.msra.mxu0 0.0
    %320 = vmatpush.msra.mxu0 0.0
    %321 = vmatpush.msra.mxu0 0.0
    %322 = vmatpush.msra.mxu0 0.0
    %323 = vmatpush.msra.mxu0 0.0
    %324 = vmatpush.msra.mxu0 0.0
    %325 = vmatpush.msra.mxu0 0.0
    %326 = vmatpush.msra.mxu0 0.0
    %327 = vmatpush.msra.mxu0 0.0
    %328 = vmatpush.msra.mxu0 0.0
    %329 = vmatpush.msra.mxu0 %v293
    %330 = vmatpush.msra.mxu0 %v291
    %331 = vmatpush.msra.mxu0 %v289
    %332 = vmatmul.f32.gmra.mxu0 %v299
    %v333 = vpop.f32.mrf.mxu0
    %v334 = vadd.f32 0.0, %v333
    %335 = vmatmul.f32.gmra.mxu0 %v302
    %v336 = vpop.f32.mrf.mxu0
    %v337 = vadd.f32 0.0, %v336
    %338 = vmatmul.f32.gmra.mxu0 %v305
    %v339 = vpop.f32.mrf.mxu0
    %v340 = vadd.f32 0.0, %v339
    %341 = vmatmul.f32.gmra.mxu0 %v308
    %v342 = vpop.f32.mrf.mxu0
    %v343 = vadd.f32 0.0, %v342
    %344 = vmatmul.f32.gmra.mxu0 %v311
    %v345 = vpop.f32.mrf.mxu0
    %v346 = vadd.f32 0.0, %v345
    %347 = vmatmul.f32.gmra.mxu0 %v314
    %v348 = vpop.f32.mrf.mxu0
    %v349 = vadd.f32 0.0, %v348
    %350 = vdwg.mxu0
    %v352 = vsel %vm297, %v125, 0
    %v355 = vsel %vm297, %v126, 0
    %v358 = vsel %vm297, %v127, 0
    %v361 = vsel %vm297, %v128, 0
    %v364 = vsel %vm297, %v129, 0
    %v367 = vsel %vm297, %v130, 0
    %369 = vmatpush.msra.mxu0 0.0
    %370 = vmatpush.msra.mxu0 0.0
    %371 = vmatpush.msra.mxu0 0.0
    %372 = vmatpush.msra.mxu0 0.0
    %373 = vmatpush.msra.mxu0 0.0
    %374 = vmatpush.msra.mxu0 0.0
    %375 = vmatpush.msra.mxu0 0.0
    %376 = vmatpush.msra.mxu0 0.0
    %377 = vmatpush.msra.mxu0 0.0
    %378 = vmatpush.msra.mxu0 0.0
    %379 = vmatpush.msra.mxu0 0.0
    %380 = vmatpush.msra.mxu0 0.0
    %381 = vmatpush.msra.mxu0 0.0
    %382 = vmatpush.msra.mxu0 %v224
    %383 = vmatpush.msra.mxu0 %v221
    %384 = vmatpush.msra.mxu0 %v218
    %385 = vmatmul.f32.gmra.mxu0 %v352
    %v386 = vpop.f32.mrf.mxu0
    %v387 = vadd.f32 %v334, %v386
    %388 = vmatmul.f32.gmra.mxu0 %v355
    %v389 = vpop.f32.mrf.mxu0
    %v390 = vadd.f32 %v337, %v389
    %391 = vmatmul.f32.gmra.mxu0 %v358
    %v392 = vpop.f32.mrf.mxu0
    %v393 = vadd.f32 %v340, %v392
    %394 = vmatmul.f32.gmra.mxu0 %v361
    %v395 = vpop.f32.mrf.mxu0
    %v396 = vadd.f32 %v343, %v395
    %397 = vmatmul.f32.gmra.mxu0 %v364
    %v398 = vpop.f32.mrf.mxu0
    %v399 = vadd.f32 %v346, %v398
    %400 = vmatmul.f32.gmra.mxu0 %v367
    %v401 = vpop.f32.mrf.mxu0
    %v402 = vadd.f32 %v349, %v401
    %403 = vdwg.mxu0
    %v404 = vadd.f32 %v387, %v268
    %v405 = vadd.f32 %v390, %v271
    %v406 = vadd.f32 %v393, %v274
    %v407 = vadd.f32 %v396, %v277
    %v408 = vadd.f32 %v399, %v280
    %v409 = vadd.f32 %v402, %v283
    %v410 = vmax.f32 %v404, 0.0
    %v411 = vmax.f32 %v405, 0.0
    %v412 = vmax.f32 %v406, 0.0
    %v413 = vmax.f32 %v407, 0.0
    %v414 = vmax.f32 %v408, 0.0
    %v415 = vmax.f32 %v409, 0.0
    %vm416 = vcmask 392192
    %v418 = vsel %vm416, %v185, 0
    %v421 = vsel %vm416, %v186, 0
    %v424 = vsel %vm416, %v187, 0
    %426 = vmatpush.msra.mxu0 0.0
    %427 = vmatpush.msra.mxu0 0.0
    %428 = vmatpush.msra.mxu0 0.0
    %429 = vmatpush.msra.mxu0 0.0
    %430 = vmatpush.msra.mxu0 0.0
    %431 = vmatpush.msra.mxu0 0.0
    %432 = vmatpush.msra.mxu0 0.0
    %433 = vmatpush.msra.mxu0 0.0
    %434 = vmatpush.msra.mxu0 0.0
    %435 = vmatpush.msra.mxu0 0.0
    %436 = vmatpush.msra.mxu0 %v415
    %437 = vmatpush.msra.mxu0 %v414
    %438 = vmatpush.msra.mxu0 %v413
    %439 = vmatpush.msra.mxu0 %v412
    %440 = vmatpush.msra.mxu0 %v411
    %441 = vmatpush.msra.mxu0 %v410
    %442 = vmatmul.f32.gmra.mxu0 %v418
    %v443 = vpop.f32.mrf.mxu0
    %v444 = vadd.f32 0.0, %v443
    %445 = vmatmul.f32.gmra.mxu0 %v421
    %v446 = vpop.f32.mrf.mxu0
    %v447 = vadd.f32 0.0, %v446
    %448 = vmatmul.f32.gmra.mxu0 %v424
    %v449 = vpop.f32.mrf.mxu0
    %v450 = vadd.f32 0.0, %v449
    %451 = vdwg.mxu0
    %v452 = vld [vmem:[%s9] sm:$0xff]
    %v453 = vld [vmem:[%s9 + $0x8] sm:$0xff]
    %v454 = vld [vmem:[%s10] sm:$0xff]
    %v455 = vld [vmem:[%s10 + $0x8] sm:$0xff]
    %v456 = vld [vmem:[%s10 + $0x10] sm:$0xff]
    %v457 = vld [vmem:[%s10 + $0x18] sm:$0xff]
    %vm458 = vcmask 261120
    %v460 = vsel %vm458, %v444, 0
    %v463 = vsel %vm458, %v447, 0
    %v466 = vsel %vm458, %v450, 0
    %468 = vmatpush.msra.mxu0 0.0
    %469 = vmatpush.msra.mxu0 0.0
    %470 = vmatpush.msra.mxu0 0.0
    %471 = vmatpush.msra.mxu0 0.0
    %472 = vmatpush.msra.mxu0 0.0
    %473 = vmatpush.msra.mxu0 0.0
    %474 = vmatpush.msra.mxu0 0.0
    %475 = vmatpush.msra.mxu0 0.0
    %476 = vmatpush.msra.mxu0 0.0
    %477 = vmatpush.msra.mxu0 0.0
    %478 = vmatpush.msra.mxu0 0.0
    %479 = vmatpush.msra.mxu0 0.0
    %480 = vmatpush.msra.mxu0 %v457
    %481 = vmatpush.msra.mxu0 %v456
    %482 = vmatpush.msra.mxu0 %v455
    %483 = vmatpush.msra.mxu0 %v454
    %484 = vmatmul.f32.gmra.mxu0 %v460
    %v485 = vpop.f32.mrf.mxu0
    %v486 = vadd.f32 0.0, %v485
    %487 = vmatmul.f32.gmra.mxu0 %v463
    %v488 = vpop.f32.mrf.mxu0
    %v489 = vadd.f32 0.0, %v488
    %490 = vmatmul.f32.gmra.mxu0 %v466
    %v491 = vpop.f32.mrf.mxu0
    %v492 = vadd.f32 0.0, %v491
    %493 = vdwg.mxu0
    %494 = vmatpush.msra.mxu0 0.0
    %495 = vmatpush.msra.mxu0 0.0
    %496 = vmatpush.msra.mxu0 0.0
    %497 = vmatpush.msra.mxu0 0.0
    %498 = vmatpush.msra.mxu0 0.0
    %499 = vmatpush.msra.mxu0 0.0
    %500 = vmatpush.msra.mxu0 0.0
    %501 = vmatpush.msra.mxu0 0.0
    %502 = vmatpush.msra.mxu0 0.0
    %503 = vmatpush.msra.mxu0 0.0
    %504 = vmatpush.msra.mxu0 0.0
    %505 = vmatpush.msra.mxu0 0.0
    %506 = vmatpush.msra.mxu0 0.0
    %507 = vmatpush.msra.mxu0 0.0
    %508 = vmatpush.msra.mxu0 %v453
    %509 = vmatpush.msra.mxu0 %v452
    %510 = vmatmul.f32.gmra.mxu0 %v192
    %v511 = vpop.f32.mrf.mxu0
    %v512 = vadd.f32 %v486, %v511
    %513 = vmatmul.f32.gmra.mxu0 %v195
    %v514 = vpop.f32.mrf.mxu0
    %v515 = vadd.f32 %v489, %v514
    %516 = vmatmul.f32.gmra.mxu0 %v198
    %v517 = vpop.f32.mrf.mxu0
    %v518 = vadd.f32 %v492, %v517
    %519 = vdwg.mxu0
    %v520 = vld [vmem:[%s11] sm:$0x1]
    %v522 = vperm.slane %v520, 0
    %v524 = vadd.f32 %v512, %v522
    %v525 = vadd.f32 %v515, %v522
    %v526 = vadd.f32 %v518, %v522
    %v527 = vmax.f32 %v524, 0.0
    %v528 = vmax.f32 %v525, 0.0
    %v529 = vmax.f32 %v526, 0.0
    %v530 = vld [vmem:[%s12] sm:$0xff]
    %v531 = vld [vmem:[%s12 + $0x8] sm:$0xff]
    %v533 = vsel %vm190, %v527, 0
    %v536 = vsel %vm190, %v528, 0
    %v539 = vsel %vm190, %v529, 0
    %541 = vmatpush.msra.mxu0 0.0
    %542 = vmatpush.msra.mxu0 0.0
    %543 = vmatpush.msra.mxu0 0.0
    %544 = vmatpush.msra.mxu0 0.0
    %545 = vmatpush.msra.mxu0 0.0
    %546 = vmatpush.msra.mxu0 0.0
    %547 = vmatpush.msra.mxu0 0.0
    %548 = vmatpush.msra.mxu0 0.0
    %549 = vmatpush.msra.mxu0 0.0
    %550 = vmatpush.msra.mxu0 0.0
    %551 = vmatpush.msra.mxu0 0.0
    %552 = vmatpush.msra.mxu0 0.0
    %553 = vmatpush.msra.mxu0 0.0
    %554 = vmatpush.msra.mxu0 0.0
    %555 = vmatpush.msra.mxu0 %v531
    %556 = vmatpush.msra.mxu0 %v530
    %557 = vmatmul.f32.gmra.mxu0 %v533
    %v558 = vpop.f32.mrf.mxu0
    %v559 = vadd.f32 0.0, %v558
    %560 = vmatmul.f32.gmra.mxu0 %v536
    %v561 = vpop.f32.mrf.mxu0
    %v562 = vadd.f32 0.0, %v561
    %563 = vmatmul.f32.gmra.mxu0 %v539
    %v564 = vpop.f32.mrf.mxu0
    %v565 = vadd.f32 0.0, %v564
    %566 = vdwg.mxu0
    %v567 = vld [vmem:[%s13] sm:$0xff]
    %v568 = vld [vmem:[%s14] sm:$0x1]
    %v570 = vperm.slane %v568, 0
    %572 = vmatpush.msra.mxu0 0.0
    %573 = vmatpush.msra.mxu0 0.0
    %574 = vmatpush.msra.mxu0 0.0
    %575 = vmatpush.msra.mxu0 0.0
    %576 = vmatpush.msra.mxu0 0.0
    %577 = vmatpush.msra.mxu0 0.0
    %578 = vmatpush.msra.mxu0 0.0
    %579 = vmatpush.msra.mxu0 0.0
    %580 = vmatpush.msra.mxu0 0.0
    %581 = vmatpush.msra.mxu0 0.0
    %582 = vmatpush.msra.mxu0 0.0
    %583 = vmatpush.msra.mxu0 0.0
    %584 = vmatpush.msra.mxu0 0.0
    %585 = vmatpush.msra.mxu0 0.0
    %586 = vmatpush.msra.mxu0 0.0
    %587 = vmatpush.msra.mxu0 %v567
    %588 = vmatmul.f32.gmra.mxu0 %v233
    %v589 = vpop.f32.mrf.mxu0
    %v590 = vadd.f32 %v570, %v589
    %591 = vmatmul.f32.gmra.mxu0 %v236
    %v592 = vpop.f32.mrf.mxu0
    %v593 = vadd.f32 %v570, %v592
    %594 = vmatmul.f32.gmra.mxu0 %v239
    %v595 = vpop.f32.mrf.mxu0
    %v596 = vadd.f32 %v570, %v595
    %597 = vmatmul.f32.gmra.mxu0 %v242
    %v598 = vpop.f32.mrf.mxu0
    %v599 = vadd.f32 %v570, %v598
    %600 = vmatmul.f32.gmra.mxu0 %v245
    %v601 = vpop.f32.mrf.mxu0
    %v602 = vadd.f32 %v570, %v601
    %603 = vmatmul.f32.gmra.mxu0 %v248
    %v604 = vpop.f32.mrf.mxu0
    %v605 = vadd.f32 %v570, %v604
    %606 = vdwg.mxu0
    %610 = vrot.lane.b32.xlu0 %v559, 96
    %v611 = vpop.permute.xlu0 %610
    %612 = vrot.lane.b32.xlu0 %v562, 96
    %v613 = vpop.permute.xlu0 %612
    %614 = vrot.lane.b32.xlu0 %v565, 96
    %v615 = vpop.permute.xlu0 %614
    %619 = vmatpush.msra.mxu0 0.0
    %620 = vmatpush.msra.mxu0 0.0
    %621 = vmatpush.msra.mxu0 0.0
    %622 = vmatpush.msra.mxu0 0.0
    %623 = vmatpush.msra.mxu0 0.0
    %624 = vmatpush.msra.mxu0 0.0
    %625 = vmatpush.msra.mxu0 0.0
    %626 = vmatpush.msra.mxu0 0.0
    %627 = vmatpush.msra.mxu0 0.0
    %628 = vmatpush.msra.mxu0 0.0
    %629 = vmatpush.msra.mxu0 0.0
    %630 = vmatpush.msra.mxu0 0.0
    %631 = vmatpush.msra.mxu0 0.0
    %632 = vmatpush.msra.mxu0 %v615
    %633 = vmatpush.msra.mxu0 %v613
    %634 = vmatpush.msra.mxu0 %v611
    %635 = vmatmul.f32.gmra.mxu0 %v299
    %v636 = vpop.f32.mrf.mxu0
    %v637 = vadd.f32 0.0, %v636
    %638 = vmatmul.f32.gmra.mxu0 %v302
    %v639 = vpop.f32.mrf.mxu0
    %v640 = vadd.f32 0.0, %v639
    %641 = vmatmul.f32.gmra.mxu0 %v305
    %v642 = vpop.f32.mrf.mxu0
    %v643 = vadd.f32 0.0, %v642
    %644 = vmatmul.f32.gmra.mxu0 %v308
    %v645 = vpop.f32.mrf.mxu0
    %v646 = vadd.f32 0.0, %v645
    %647 = vmatmul.f32.gmra.mxu0 %v311
    %v648 = vpop.f32.mrf.mxu0
    %v649 = vadd.f32 0.0, %v648
    %650 = vmatmul.f32.gmra.mxu0 %v314
    %v651 = vpop.f32.mrf.mxu0
    %v652 = vadd.f32 0.0, %v651
    %653 = vdwg.mxu0
    %654 = vmatpush.msra.mxu0 0.0
    %655 = vmatpush.msra.mxu0 0.0
    %656 = vmatpush.msra.mxu0 0.0
    %657 = vmatpush.msra.mxu0 0.0
    %658 = vmatpush.msra.mxu0 0.0
    %659 = vmatpush.msra.mxu0 0.0
    %660 = vmatpush.msra.mxu0 0.0
    %661 = vmatpush.msra.mxu0 0.0
    %662 = vmatpush.msra.mxu0 0.0
    %663 = vmatpush.msra.mxu0 0.0
    %664 = vmatpush.msra.mxu0 0.0
    %665 = vmatpush.msra.mxu0 0.0
    %666 = vmatpush.msra.mxu0 0.0
    %667 = vmatpush.msra.mxu0 %v565
    %668 = vmatpush.msra.mxu0 %v562
    %669 = vmatpush.msra.mxu0 %v559
    %670 = vmatmul.f32.gmra.mxu0 %v352
    %v671 = vpop.f32.mrf.mxu0
    %v672 = vadd.f32 %v637, %v671
    %673 = vmatmul.f32.gmra.mxu0 %v355
    %v674 = vpop.f32.mrf.mxu0
    %v675 = vadd.f32 %v640, %v674
    %676 = vmatmul.f32.gmra.mxu0 %v358
    %v677 = vpop.f32.mrf.mxu0
    %v678 = vadd.f32 %v643, %v677
    %679 = vmatmul.f32.gmra.mxu0 %v361
    %v680 = vpop.f32.mrf.mxu0
    %v681 = vadd.f32 %v646, %v680
    %682 = vmatmul.f32.gmra.mxu0 %v364
    %v683 = vpop.f32.mrf.mxu0
    %v684 = vadd.f32 %v649, %v683
    %685 = vmatmul.f32.gmra.mxu0 %v367
    %v686 = vpop.f32.mrf.mxu0
    %v687 = vadd.f32 %v652, %v686
    %688 = vdwg.mxu0
    %v689 = vadd.f32 %v672, %v590
    %v690 = vadd.f32 %v675, %v593
    %v691 = vadd.f32 %v678, %v596
    %v692 = vadd.f32 %v681, %v599
    %v693 = vadd.f32 %v684, %v602
    %v694 = vadd.f32 %v687, %v605
    %v695 = vmax.f32 %v689, 0.0
    %v696 = vmax.f32 %v690, 0.0
    %v697 = vmax.f32 %v691, 0.0
    %v698 = vmax.f32 %v692, 0.0
    %v699 = vmax.f32 %v693, 0.0
    %v700 = vmax.f32 %v694, 0.0
    %701 = vmatpush.msra.mxu0 0.0
    %702 = vmatpush.msra.mxu0 0.0
    %703 = vmatpush.msra.mxu0 0.0
    %704 = vmatpush.msra.mxu0 0.0
    %705 = vmatpush.msra.mxu0 0.0
    %706 = vmatpush.msra.mxu0 0.0
    %707 = vmatpush.msra.mxu0 0.0
    %708 = vmatpush.msra.mxu0 0.0
    %709 = vmatpush.msra.mxu0 0.0
    %710 = vmatpush.msra.mxu0 0.0
    %711 = vmatpush.msra.mxu0 %v700
    %712 = vmatpush.msra.mxu0 %v699
    %713 = vmatpush.msra.mxu0 %v698
    %714 = vmatpush.msra.mxu0 %v697
    %715 = vmatpush.msra.mxu0 %v696
    %716 = vmatpush.msra.mxu0 %v695
    %717 = vmatmul.f32.gmra.mxu0 %v418
    %v718 = vpop.f32.mrf.mxu0
    %v719 = vadd.f32 0.0, %v718
    %720 = vmatmul.f32.gmra.mxu0 %v421
    %v721 = vpop.f32.mrf.mxu0
    %v722 = vadd.f32 0.0, %v721
    %723 = vmatmul.f32.gmra.mxu0 %v424
    %v724 = vpop.f32.mrf.mxu0
    %v725 = vadd.f32 0.0, %v724
    %726 = vdwg.mxu0
    %v727 = vld [vmem:[%s15] sm:$0xff]
    %v728 = vld [vmem:[%s15 + $0x8] sm:$0xff]
    %v729 = vld [vmem:[%s16] sm:$0xff]
    %v730 = vld [vmem:[%s16 + $0x8] sm:$0xff]
    %v731 = vld [vmem:[%s16 + $0x10] sm:$0xff]
    %v732 = vld [vmem:[%s16 + $0x18] sm:$0xff]
    %v734 = vsel %vm458, %v719, 0
    %v737 = vsel %vm458, %v722, 0
    %v740 = vsel %vm458, %v725, 0
    %742 = vmatpush.msra.mxu0 0.0
    %743 = vmatpush.msra.mxu0 0.0
    %744 = vmatpush.msra.mxu0 0.0
    %745 = vmatpush.msra.mxu0 0.0
    %746 = vmatpush.msra.mxu0 0.0
    %747 = vmatpush.msra.mxu0 0.0
    %748 = vmatpush.msra.mxu0 0.0
    %749 = vmatpush.msra.mxu0 0.0
    %750 = vmatpush.msra.mxu0 0.0
    %751 = vmatpush.msra.mxu0 0.0
    %752 = vmatpush.msra.mxu0 0.0
    %753 = vmatpush.msra.mxu0 0.0
    %754 = vmatpush.msra.mxu0 %v732
    %755 = vmatpush.msra.mxu0 %v731
    %756 = vmatpush.msra.mxu0 %v730
    %757 = vmatpush.msra.mxu0 %v729
    %758 = vmatmul.f32.gmra.mxu0 %v734
    %v759 = vpop.f32.mrf.mxu0
    %v760 = vadd.f32 0.0, %v759
    %761 = vmatmul.f32.gmra.mxu0 %v737
    %v762 = vpop.f32.mrf.mxu0
    %v763 = vadd.f32 0.0, %v762
    %764 = vmatmul.f32.gmra.mxu0 %v740
    %v765 = vpop.f32.mrf.mxu0
    %v766 = vadd.f32 0.0, %v765
    %767 = vdwg.mxu0
    %768 = vmatpush.msra.mxu0 0.0
    %769 = vmatpush.msra.mxu0 0.0
    %770 = vmatpush.msra.mxu0 0.0
    %771 = vmatpush.msra.mxu0 0.0
    %772 = vmatpush.msra.mxu0 0.0
    %773 = vmatpush.msra.mxu0 0.0
    %774 = vmatpush.msra.mxu0 0.0
    %775 = vmatpush.msra.mxu0 0.0
    %776 = vmatpush.msra.mxu0 0.0
    %777 = vmatpush.msra.mxu0 0.0
    %778 = vmatpush.msra.mxu0 0.0
    %779 = vmatpush.msra.mxu0 0.0
    %780 = vmatpush.msra.mxu0 0.0
    %781 = vmatpush.msra.mxu0 0.0
    %782 = vmatpush.msra.mxu0 %v728
    %783 = vmatpush.msra.mxu0 %v727
    %784 = vmatmul.f32.gmra.mxu0 %v533
    %v785 = vpop.f32.mrf.mxu0
    %v786 = vadd.f32 %v760, %v785
    %787 = vmatmul.f32.gmra.mxu0 %v536
    %v788 = vpop.f32.mrf.mxu0
    %v789 = vadd.f32 %v763, %v788
    %790 = vmatmul.f32.gmra.mxu0 %v539
    %v791 = vpop.f32.mrf.mxu0
    %v792 = vadd.f32 %v766, %v791
    %793 = vdwg.mxu0
    %v794 = vld [vmem:[%s17] sm:$0x1]
    %v796 = vperm.slane %v794, 0
    %v798 = vadd.f32 %v786, %v796
    %v799 = vadd.f32 %v789, %v796
    %v800 = vadd.f32 %v792, %v796
    %v801 = vmax.f32 %v798, 0.0
    %v802 = vmax.f32 %v799, 0.0
    %v803 = vmax.f32 %v800, 0.0
    %v804 = vld [vmem:[%s2] sm:$0x1]
    %v805 = vperm.slane %v804, 0
    %vm806 = vcmp.eq.s32.totalorder %v174, %v805
    %v807 = vsel %vm806, 1, 0
    %v808 = vcvt.s32.f32 %v807
    %v810 = vsel %vm297, %v808, 0
    %812 = vmatpush.msra.mxu0 0.0
    %813 = vmatpush.msra.mxu0 0.0
    %814 = vmatpush.msra.mxu0 0.0
    %815 = vmatpush.msra.mxu0 0.0
    %816 = vmatpush.msra.mxu0 0.0
    %817 = vmatpush.msra.mxu0 0.0
    %818 = vmatpush.msra.mxu0 0.0
    %819 = vmatpush.msra.mxu0 0.0
    %820 = vmatpush.msra.mxu0 0.0
    %821 = vmatpush.msra.mxu0 0.0
    %822 = vmatpush.msra.mxu0 0.0
    %823 = vmatpush.msra.mxu0 0.0
    %824 = vmatpush.msra.mxu0 0.0
    %825 = vmatpush.msra.mxu0 %v803
    %826 = vmatpush.msra.mxu0 %v802
    %827 = vmatpush.msra.mxu0 %v801
    %828 = vmatmul.f32.gmra.mxu0 %v810
    %v829 = vpop.f32.mrf.mxu0
    %v830 = vadd.f32 0.0, %v829
    %831 = vdwg.mxu0
    %vm832 = vcmask 189440
    %v833 = vsel %vm832, %v808, 0.0
    %834 = vadd.xlane.f32.xlu0 %v833
    %v835 = vpop.xlane.xlu0 %834
    %v836 = vmax.f32 %v835, 1.0
    %v837 = vrcp.pop %v836
    %v838 = vmul.f32 %v836, %v837
    %v839 = vsub.f32 1.0, %v838
    %v840 = vmul.f32 %v837, %v839
    %v841 = vadd.f32 %v837, %v840
    %vm842 = vweird.f32 %v836
    %vm843 = vweird.f32 %v837
    %vm844 = vmor %vm842, %vm843
    %v845 = vsel %vm844, %v837, %v841
    %v846 = vand.u32 2147483647, %v836
    %vm847 = vcmp.eq.f32.partialorder %v846, 8.507059e+37
    %v848 = vand.u32 %v836, 2147483648
    %v849 = vor.u32 1.1754944e-38, %v848
    %v850 = vsel %vm847, %v849, %v845
    %v851 = vmul.f32 %v830, %v850
    %v852 = vld [vmem:[%s18] sm:$0xff]
    %v853 = vld [vmem:[%s18 + $0x8] sm:$0xff]
    %v854 = vld [vmem:[%s19] sm:$0x1]
    %v856 = vperm.slane %v854, 0
    %v859 = vsel %vm190, %v851, 0
    %861 = vmatpush.msra.mxu0 0.0
    %862 = vmatpush.msra.mxu0 0.0
    %863 = vmatpush.msra.mxu0 0.0
    %864 = vmatpush.msra.mxu0 0.0
    %865 = vmatpush.msra.mxu0 0.0
    %866 = vmatpush.msra.mxu0 0.0
    %867 = vmatpush.msra.mxu0 0.0
    %868 = vmatpush.msra.mxu0 0.0
    %869 = vmatpush.msra.mxu0 0.0
    %870 = vmatpush.msra.mxu0 0.0
    %871 = vmatpush.msra.mxu0 0.0
    %872 = vmatpush.msra.mxu0 0.0
    %873 = vmatpush.msra.mxu0 0.0
    %874 = vmatpush.msra.mxu0 0.0
    %875 = vmatpush.msra.mxu0 %v853
    %876 = vmatpush.msra.mxu0 %v852
    %877 = vmatmul.f32.gmra.mxu0 %v859
    %v878 = vpop.f32.mrf.mxu0
    %v879 = vadd.f32 %v856, %v878
    %880 = vdwg.mxu0
    %v881 = vmax.f32 %v879, 0.0
    %v882 = vld [vmem:[%s20] sm:$0xff]
    %v883 = vld [vmem:[%s20 + $0x8] sm:$0xff]
    %v884 = vld [vmem:[%s20 + $0x10] sm:$0xff]
    %v885 = vld [vmem:[%s20 + $0x18] sm:$0xff]
    %v886 = vld [vmem:[%s20 + $0x20] sm:$0xff]
    %v887 = vld [vmem:[%s20 + $0x28] sm:$0xff]
    %v888 = vld [vmem:[%s20 + $0x30] sm:$0xff]
    %v889 = vld [vmem:[%s20 + $0x38] sm:$0xff]
    %v890 = vld [vmem:[%s20 + $0x40] sm:$0xff]
    %v891 = vld [vmem:[%s20 + $0x48] sm:$0xff]
    %v892 = vld [vmem:[%s20 + $0x50] sm:$0xff]
    %v893 = vld [vmem:[%s20 + $0x58] sm:$0xff]
    %v894 = vld [vmem:[%s20 + $0x60] sm:$0xff]
    %v895 = vld [vmem:[%s20 + $0x68] sm:$0xff]
    %v896 = vld [vmem:[%s20 + $0x70] sm:$0xff]
    %v897 = vld [vmem:[%s20 + $0x78] sm:$0xff]
    %v898 = vld [vmem:[%s21] sm:$0x1]
    %v900 = vperm.slane %v898, 0
    %902 = vmatpush.msra.mxu0 %v897
    %903 = vmatpush.msra.mxu0 %v896
    %904 = vmatpush.msra.mxu0 %v895
    %905 = vmatpush.msra.mxu0 %v894
    %906 = vmatpush.msra.mxu0 %v893
    %907 = vmatpush.msra.mxu0 %v892
    %908 = vmatpush.msra.mxu0 %v891
    %909 = vmatpush.msra.mxu0 %v890
    %910 = vmatpush.msra.mxu0 %v889
    %911 = vmatpush.msra.mxu0 %v888
    %912 = vmatpush.msra.mxu0 %v887
    %913 = vmatpush.msra.mxu0 %v886
    %914 = vmatpush.msra.mxu0 %v885
    %915 = vmatpush.msra.mxu0 %v884
    %916 = vmatpush.msra.mxu0 %v883
    %917 = vmatpush.msra.mxu0 %v882
    %918 = vmatmul.f32.gmra.mxu0 %v881
    %v919 = vpop.f32.mrf.mxu0
    %v920 = vadd.f32 %v900, %v919
    %921 = vdwg.mxu0
    %v922 = vmax.f32 %v920, 0.0
    %v923 = vld [vmem:[%s22] sm:$0xff]
    %v924 = vld [vmem:[%s22 + $0x8] sm:$0xff]
    %v925 = vld [vmem:[%s22 + $0x10] sm:$0xff]
    %v926 = vld [vmem:[%s22 + $0x18] sm:$0xff]
    %v927 = vld [vmem:[%s22 + $0x20] sm:$0xff]
    %v928 = vld [vmem:[%s22 + $0x28] sm:$0xff]
    %v929 = vld [vmem:[%s22 + $0x30] sm:$0xff]
    %v930 = vld [vmem:[%s22 + $0x38] sm:$0xff]
    %v931 = vld [vmem:[%s22 + $0x40] sm:$0xff]
    %v932 = vld [vmem:[%s22 + $0x48] sm:$0xff]
    %v933 = vld [vmem:[%s22 + $0x50] sm:$0xff]
    %v934 = vld [vmem:[%s22 + $0x58] sm:$0xff]
    %v935 = vld [vmem:[%s22 + $0x60] sm:$0xff]
    %v936 = vld [vmem:[%s22 + $0x68] sm:$0xff]
    %v937 = vld [vmem:[%s22 + $0x70] sm:$0xff]
    %v938 = vld [vmem:[%s22 + $0x78] sm:$0xff]
    %v939 = vld [vmem:[%s23] sm:$0x1]
    %v941 = vperm.slane %v939, 0
    %943 = vmatpush.msra.mxu0 %v938
    %944 = vmatpush.msra.mxu0 %v937
    %945 = vmatpush.msra.mxu0 %v936
    %946 = vmatpush.msra.mxu0 %v935
    %947 = vmatpush.msra.mxu0 %v934
    %948 = vmatpush.msra.mxu0 %v933
    %949 = vmatpush.msra.mxu0 %v932
    %950 = vmatpush.msra.mxu0 %v931
    %951 = vmatpush.msra.mxu0 %v930
    %952 = vmatpush.msra.mxu0 %v929
    %953 = vmatpush.msra.mxu0 %v928
    %954 = vmatpush.msra.mxu0 %v927
    %955 = vmatpush.msra.mxu0 %v926
    %956 = vmatpush.msra.mxu0 %v925
    %957 = vmatpush.msra.mxu0 %v924
    %958 = vmatpush.msra.mxu0 %v923
    %959 = vmatmul.f32.gmra.mxu0 %v922
    %v960 = vpop.f32.mrf.mxu0
    %v961 = vadd.f32 %v941, %v960
    %962 = vdwg.mxu0
    %vm963 = vcmask 25600
    %964 = vst.msk [vmem:[#allocation2] sm:$0x3] %vm963, %v961
    // Predicated region
    $region98: #{pmhci_network03_forward.1} parent=1 // pred_check
      _
    $region99: #{pmhci_network03_forward.1} parent=1 // pred_check_branch
      %966 = sbr.rel (0) target = $region101
    $region100: #{pmhci_network03_forward.1} parent=1 // pred_region
      %968 = vsyncadd [#allocation3], 0
      %s970 = sshll.u32 [#allocation2], 4
      %s971 = int_to_ptr.vmem [resolvable:$true] %s970
      %s972 = sshll.u32 %s24, 4
      %s973 = int_to_ptr.hbm [resolvable:$true] %s972
      %975 = dma.vmem_to_hbm [thread:$0]  %s971, 32, %s973, [#allocation3]
    $region101: #{pmhci_network03_forward.1} parent=1 // pred_fallthru
      _
    // Predicated region
    $region102: #{pmhci_network03_forward.1} parent=1 // pred_check
      _
    $region103: #{pmhci_network03_forward.1} parent=1 // pred_check_branch
      %977 = sbr.rel (0) target = $region105
    $region104: #{pmhci_network03_forward.1} parent=1 // pred_region
      %979 = dma.done [#allocation3], 32
    $region105: #{pmhci_network03_forward.1} parent=1 // pred_fallthru
      _
    %980 = vsyncpa [#allocation3], 1

</llo_original>
